<compile_context>
chip_gen: v7x
topology: tpu7x:2x2x1
jax: 0.10.0
libtpu: 0.0.40
codegen_flags: <defaults>
</compile_context>

<pallas_src>
import functools

import jax
import jax.numpy as jnp
from jax.experimental import pallas as pl
from jax.experimental.pallas import tpu as pltpu

_LANES = 128

# Row offsets of each (pre-padded) weight block inside the packed weight slab.
_OFF_SAGE1 = 0      # [256,128]: rows 0:16  = conv1.lin_l, rows 128:144 = conv1.lin_r
_OFF_SAGE2 = 256    # [256,128]: rows 0:64  = conv2.lin_l, rows 128:192 = conv2.lin_r
_OFF_MLP1 = 512     # [256,128]  object_fc Linear(256,128)
_OFF_MLP2 = 768     # [128,128]  object_fc Linear(128,64)
_OFF_MLP3 = 896     # [128,128]  object_fc Linear(64,32)
_OFF_MLP45 = 1024   # [128,128]  folded Linear(32,16) @ Linear(16,8)
_OFF_MLP6 = 1152    # [128,128]  relation_fc Linear(8,4)
_OFF_MLP7 = 1280    # [128,128]  relation_fc Linear(4,C)
_W_ROWS = 1408


# ----------------------------------------------------------------------------
# BlockSpec helper: single grid point, full-array blocks (shapes are small).
# ----------------------------------------------------------------------------
def _spec(shape):
    nd = len(shape)
    return pl.BlockSpec(shape, lambda i, _nd=nd: (0,) * _nd)


# ----------------------------------------------------------------------------
# Fully fused forward kernel.
#   x_ref        [N, 128]      node features (16 real cols + zero pad)
#   ei_cols_ref  [E_pad, 2]    int32 edge table, row e = (src[e], dst[e]); pad = -1
#   ei_rows_ref  [2, E_pad]    same table, transposed layout (row 1 = dst)
#   w_ref        [1408, 128]   packed weight slab (layout: _OFF_* above)
#   b_ref        [8, 128]      packed bias slab
#   o_ref        [E_pad, 128]  relation logits (cols >= C are zero)
# ----------------------------------------------------------------------------
def _fused_scene_graph_kernel(x_ref, ei_cols_ref, ei_rows_ref, w_ref, b_ref, o_ref):
    n = x_ref.shape[0]
    e_pad = ei_cols_ref.shape[0]

    def dot(a, b):
        return jnp.dot(a, b, preferred_element_type=jnp.float32)

    ei_c = ei_cols_ref[...]                              # [E_pad, 2] int32
    ei_r = ei_rows_ref[...]                              # [2, E_pad] int32

    # One-hot edge selectors built on the VPU (padding rows are -1 -> all-zero).
    node_row = jax.lax.broadcasted_iota(jnp.int32, (e_pad, n), 1)
    node_col = jax.lax.broadcasted_iota(jnp.int32, (n, e_pad), 0)
    sel_src = (node_row == ei_c[:, 0:1]).astype(jnp.float32)     # [E_pad, N]
    sel_dst = (node_row == ei_c[:, 1:2]).astype(jnp.float32)     # [E_pad, N]
    sel_dst_t = (node_col == ei_r[1:2, :]).astype(jnp.float32)   # [N, E_pad]

    # Mean-aggregation matrix: adj[i, j] = (#edges j->i) / max(in_degree(i), 1)
    adj = dot(sel_dst_t, sel_src)                        # [N, N] edge counts
    deg = jnp.sum(adj, axis=1, keepdims=True)
    adj = adj / jnp.maximum(deg, 1.0)

    x = x_ref[...]                                       # [N, 128]
    b = b_ref[...]                                       # [8, 128]

    # --- SAGEConv(16,64) + ReLU : lin_l/lin_r fused into one stacked matmul.
    cat1 = jnp.concatenate([dot(adj, x), x], axis=-1)    # [N, 256] (tile-aligned)
    h1 = jnp.maximum(
        dot(cat1, w_ref[_OFF_SAGE1:_OFF_SAGE2, :]) + b[0:1, :], 0.0)   # [N,128]

    # --- SAGEConv(64,128) + ReLU.
    cat2 = jnp.concatenate([dot(adj, h1), h1], axis=-1)                # [N,256]
    h2 = jnp.maximum(
        dot(cat2, w_ref[_OFF_SAGE2:_OFF_MLP1, :]) + b[1:2, :], 0.0)    # [N,128]

    # --- Per-edge gather + concat: [h2[src] | h2[dst]] via one-hot matmuls.
    comb = jnp.concatenate(
        [dot(sel_src, h2), dot(sel_dst, h2)], axis=-1)                 # [E_pad,256]

    # --- object_fc + relation_fc (dropout = identity; 32->16->8 folded).
    h = jnp.maximum(dot(comb, w_ref[_OFF_MLP1:_OFF_MLP2, :]) + b[2:3, :], 0.0)
    h = jnp.maximum(dot(h, w_ref[_OFF_MLP2:_OFF_MLP3, :]) + b[3:4, :], 0.0)
    h = jnp.maximum(dot(h, w_ref[_OFF_MLP3:_OFF_MLP45, :]) + b[4:5, :], 0.0)
    h = jnp.maximum(dot(h, w_ref[_OFF_MLP45:_OFF_MLP6, :]) + b[5:6, :], 0.0)
    h = jnp.maximum(dot(h, w_ref[_OFF_MLP6:_OFF_MLP7, :]) + b[6:7, :], 0.0)
    o_ref[...] = dot(h, w_ref[_OFF_MLP7:_W_ROWS, :]) + b[7:8, :]       # lane-dense store


# ----------------------------------------------------------------------------
# Deterministic parameter init (matches nn.Linear default uniform init ranges).
# ----------------------------------------------------------------------------
def _init_linear(key, fan_in, fan_out, bias=True):
    kw, kb = jax.random.split(key)
    bound = 1.0 / float(fan_in) ** 0.5
    w = jax.random.uniform(kw, (fan_in, fan_out), jnp.float32, -bound, bound)
    b = (jax.random.uniform(kb, (1, fan_out), jnp.float32, -bound, bound)
         if bias else jnp.zeros((1, fan_out), jnp.float32))
    return w, b


def init_params(key, num_relation_classes):
    keys = jax.random.split(key, 16)
    params = {}
    # SAGEConv(16, 64): lin_l (neighbor, with bias) + lin_r (root, no bias)
    wl1, bl1 = _init_linear(keys[0], 16, 64, bias=True)
    wr1, _ = _init_linear(keys[1], 16, 64, bias=False)
    params["conv1"] = (wl1, bl1, wr1)
    # SAGEConv(64, 128)
    wl2, bl2 = _init_linear(keys[2], 64, 128, bias=True)
    wr2, _ = _init_linear(keys[3], 64, 128, bias=False)
    params["conv2"] = (wl2, bl2, wr2)
    # object_fc + relation_fc (7 Linear layers total)
    dims = [(256, 128), (128, 64), (64, 32), (32, 16),
            (16, 8), (8, 4), (4, num_relation_classes)]
    params["mlp"] = [_init_linear(keys[4 + i], fi, fo) for i, (fi, fo) in enumerate(dims)]
    return params


# ----------------------------------------------------------------------------
# One-time packing: fold the no-ReLU Linear pair, zero-pad every weight to
# 128 output lanes, concatenate into one weight slab + one bias slab.
# ----------------------------------------------------------------------------
def _pad_block(w, rows):
    out = jnp.zeros((rows, _LANES), jnp.float32)
    return out.at[: w.shape[0], : w.shape[1]].set(w.astype(jnp.float32))


def prepare_params(params):
    hp = jax.lax.Precision.HIGHEST
    wl1, bl1, wr1 = params["conv1"]
    wl2, bl2, wr2 = params["conv2"]
    (w1, b1), (w2, b2), (w3, b3), (w4, b4), (w5, b5), (w6, b6), (w7, b7) = params["mlp"]

    # Exact fold: there is no nonlinearity between object_fc[-1] and relation_fc[0].
    w45 = jnp.dot(w4, w5, precision=hp)          # [32, 8]
    b45 = jnp.dot(b4, w5, precision=hp) + b5     # [1, 8]

    sage1 = (jnp.zeros((256, _LANES), jnp.float32)
             .at[0:16, 0:64].set(wl1)            # lin_l acting on mean-aggregated x
             .at[128:144, 0:64].set(wr1))        # lin_r acting on x itself
    sage2 = (jnp.zeros((256, _LANES), jnp.float32)
             .at[0:64, :].set(wl2)
             .at[128:192, :].set(wr2))

    w_slab = jnp.concatenate([
        sage1, sage2,
        _pad_block(w1, 256), _pad_block(w2, 128), _pad_block(w3, 128),
        _pad_block(w45, 128), _pad_block(w6, 128), _pad_block(w7, 128),
    ], axis=0)                                   # [1408, 128]
    b_slab = jnp.concatenate(
        [_pad_block(bi, 1) for bi in (bl1, bl2, b1, b2, b3, b45, b6, b7)],
        axis=0)                                  # [8, 128]
    return {"w": w_slab, "b": b_slab}


# ----------------------------------------------------------------------------
# Full forward pass: compact int32 edge tables in XLA, one fused kernel.
# ----------------------------------------------------------------------------
@functools.partial(jax.jit, static_argnames=("num_relation_classes",))
def scene_graph_forward(packed, x, edge_index, relations, num_relation_classes):
    n, f = x.shape
    e = edge_index.shape[1]
    e_pad = ((e + 7) // 8) * 8

    # Pad node features to 128 lanes so all in-kernel concats are tile-aligned.
    x_p = jnp.zeros((n, _LANES), jnp.float32).at[:, :f].set(x)

    # Compact edge tables; padded edge slots get -1 (matches no node id, so the
    # in-kernel one-hot rows are all-zero and contribute nothing).
    ei_rows = (jnp.full((2, e_pad), -1, jnp.int32)
               .at[:, :e].set(edge_index.astype(jnp.int32)))          # [2, E_pad]
    ei_cols = ei_rows.T                                               # [E_pad, 2]

    out_pad = pl.pallas_call(
        _fused_scene_graph_kernel,
        grid=(1,),
        in_specs=[_spec(x_p.shape), _spec(ei_cols.shape), _spec(ei_rows.shape),
                  _spec(packed["w"].shape), _spec(packed["b"].shape)],
        out_specs=_spec((e_pad, _LANES)),
        out_shape=jax.ShapeDtypeStruct((e_pad, _LANES), jnp.float32),
        compiler_params=pltpu.CompilerParams(dimension_semantics=("arbitrary",)),
    )(x_p, ei_cols, ei_rows, packed["w"], packed["b"])

    relation_outputs = out_pad[:e, :num_relation_classes]   # [E, C]
    relation_labels = relations                              # == data.y
    return relation_outputs, relation_labels


# ----------------------------------------------------------------------------
# Pure-JAX reference (mirrors the PyTorch forward) for validation.
# ----------------------------------------------------------------------------
def _reference_forward(params, x, edge_index):
    hp = jax.lax.Precision.HIGHEST
    n = x.shape[0]
    src, dst = edge_index[0], edge_index[1]
    wl1, bl1, wr1 = params["conv1"]
    wl2, bl2, wr2 = params["conv2"]

    adj = jnp.zeros((n, n), jnp.float32).at[dst, src].add(1.0)
    adjn = adj / jnp.maximum(adj.sum(axis=1, keepdims=True), 1.0)

    def sage(h, wl, bl, wr):
        agg = jnp.dot(adjn, h, precision=hp)
        return jax.nn.relu(jnp.dot(agg, wl, precision=hp) + bl
                           + jnp.dot(h, wr, precision=hp))

    h1 = sage(x, wl1, bl1, wr1)
    h2 = sage(h1, wl2, bl2, wr2)
    h = jnp.concatenate([h2[src], h2[dst]], axis=-1)
    acts = (True, True, True, False, True, True, False)
    for (w, b), act in zip(params["mlp"], acts):
        h = jnp.dot(h, w, precision=hp) + b
        if act:
            h = jax.nn.relu(h)
    return h


if __name__ == "__main__":
    NUM_NODES = 8
    NUM_EDGES = 12
    NUM_CLASSES = 5
    IN_FEATURES = 16

    root = jax.random.PRNGKey(0)
    k_params, k_x, k_src, k_dst, k_y = jax.random.split(root, 5)

    params = init_params(k_params, NUM_CLASSES)
    packed = prepare_params(params)

    x = jax.random.normal(k_x, (NUM_NODES, IN_FEATURES), jnp.float32)          # data.x
    src = jax.random.randint(k_src, (NUM_EDGES,), 0, NUM_NODES, jnp.int32)
    dst = jax.random.randint(k_dst, (NUM_EDGES,), 0, NUM_NODES, jnp.int32)
    edge_index = jnp.stack([src, dst], axis=0)                                 # data.edge_index
    relations = jax.random.randint(k_y, (NUM_EDGES,), 0, NUM_CLASSES, jnp.int32)  # data.y

    outs, labels = scene_graph_forward(packed, x, edge_index, relations, NUM_CLASSES)
    outs = jax.block_until_ready(outs)
    labels = jax.block_until_ready(labels)

    assert outs.shape == (NUM_EDGES, NUM_CLASSES), outs.shape
    assert labels.shape == (NUM_EDGES,), labels.shape

    ref = _reference_forward(params, x, edge_index)
    max_err = float(jnp.max(jnp.abs(outs - ref)))
    assert max_err < 5e-2, f"numerical mismatch vs reference: {max_err}"

    print("KERNEL_OK")
</pallas_src>

<mosaic_0001>
module attributes {stable_mosaic.version = 11 : i64} {
  func.func @_fused_scene_graph_kernel(%arg0: i32, %arg1: memref<8x128xf32, #tpu.memory_space<vmem>>, %arg2: memref<16x2xi32, #tpu.memory_space<vmem>>, %arg3: memref<2x16xi32, #tpu.memory_space<vmem>>, %arg4: memref<1408x128xf32, #tpu.memory_space<vmem>>, %arg5: memref<8x128xf32, #tpu.memory_space<vmem>>, %arg6: memref<16x128xf32, #tpu.memory_space<vmem>>) attributes {dimension_semantics = [#tpu.dimension_semantics<arbitrary>], iteration_bounds = array<i64: 1>, scalar_prefetch = 0 : i64, scratch_operands = 0 : i64, tpu.core_type = #tpu.core_type<tc>, window_params = [{pipeline_mode = #tpu.pipeline_mode<synchronous>, transform_indices = @transform_0, window_bounds = array<i64: 8, 128>}, {pipeline_mode = #tpu.pipeline_mode<synchronous>, transform_indices = @transform_1, window_bounds = array<i64: 16, 2>}, {pipeline_mode = #tpu.pipeline_mode<synchronous>, transform_indices = @transform_2, window_bounds = array<i64: 2, 16>}, {pipeline_mode = #tpu.pipeline_mode<synchronous>, transform_indices = @transform_3, window_bounds = array<i64: 1408, 128>}, {pipeline_mode = #tpu.pipeline_mode<synchronous>, transform_indices = @transform_4, window_bounds = array<i64: 8, 128>}, {pipeline_mode = #tpu.pipeline_mode<synchronous>, transform_indices = @transform_5, window_bounds = array<i64: 16, 128>}]} {
    %c0 = arith.constant 0 : index
    %c0_0 = arith.constant 0 : index
    %0 = vector.load %arg2[%c0, %c0_0] : memref<16x2xi32, #tpu.memory_space<vmem>>, vector<16x2xi32>
    %c0_1 = arith.constant 0 : index
    %c0_2 = arith.constant 0 : index
    %1 = vector.load %arg3[%c0_1, %c0_2] : memref<2x16xi32, #tpu.memory_space<vmem>>, vector<2x16xi32>
    %2 = tpu.iota {dimensions = array<i32: 1>} : vector<16x8xi32>
    %3 = tpu.iota {dimensions = array<i32: 0>} : vector<8x16xi32>
    %4 = vector.extract_strided_slice %0 {offsets = [0, 0], sizes = [16, 1], strides = [1, 1]} : vector<16x2xi32> to vector<16x1xi32>
    %5 = vector.broadcast %4 : vector<16x1xi32> to vector<16x8xi32>
    %6 = arith.cmpi eq, %2, %5 : vector<16x8xi32>
    %7 = arith.extui %6 : vector<16x8xi1> to vector<16x8xi32>
    %8 = arith.sitofp %7 : vector<16x8xi32> to vector<16x8xf32>
    %9 = vector.extract_strided_slice %0 {offsets = [0, 1], sizes = [16, 1], strides = [1, 1]} : vector<16x2xi32> to vector<16x1xi32>
    %10 = vector.broadcast %9 : vector<16x1xi32> to vector<16x8xi32>
    %11 = arith.cmpi eq, %2, %10 : vector<16x8xi32>
    %12 = arith.extui %11 : vector<16x8xi1> to vector<16x8xi32>
    %13 = arith.sitofp %12 : vector<16x8xi32> to vector<16x8xf32>
    %14 = vector.extract_strided_slice %1 {offsets = [1, 0], sizes = [1, 16], strides = [1, 1]} : vector<2x16xi32> to vector<1x16xi32>
    %15 = vector.broadcast %14 : vector<1x16xi32> to vector<8x16xi32>
    %16 = arith.cmpi eq, %3, %15 : vector<8x16xi32>
    %17 = arith.extui %16 : vector<8x16xi1> to vector<8x16xi32>
    %18 = arith.sitofp %17 : vector<8x16xi32> to vector<8x16xf32>
    %cst = arith.constant dense<0.000000e+00> : vector<8x8xf32>
    %19 = tpu.matmul %18, %8, %cst {dimension_numbers = #tpu.dot_dimension_numbers<[1], [0], [0], [1], [0, 0, 1, 1], [], []>} : vector<8x16xf32>, vector<16x8xf32>, vector<8x8xf32> -> vector<8x8xf32>
    %cst_3 = arith.constant dense<0.000000e+00> : vector<8xf32>
    %20 = vector.multi_reduction <add>, %19, %cst_3 [1] : vector<8x8xf32> to vector<8xf32>
    %21 = vector.shape_cast %20 : vector<8xf32> to vector<8x1xf32>
    %cst_4 = arith.constant 1.000000e+00 : f32
    %22 = vector.broadcast %cst_4 : f32 to vector<8x1xf32>
    %23 = arith.maximumf %21, %22 : vector<8x1xf32>
    %24 = vector.broadcast %23 : vector<8x1xf32> to vector<8x8xf32>
    %25 = arith.divf %19, %24 : vector<8x8xf32>
    %c0_5 = arith.constant 0 : index
    %c0_6 = arith.constant 0 : index
    %26 = vector.load %arg1[%c0_5, %c0_6] : memref<8x128xf32, #tpu.memory_space<vmem>>, vector<8x128xf32>
    %c0_7 = arith.constant 0 : index
    %c0_8 = arith.constant 0 : index
    %27 = vector.load %arg5[%c0_7, %c0_8] : memref<8x128xf32, #tpu.memory_space<vmem>>, vector<8x128xf32>
    %cst_9 = arith.constant dense<0.000000e+00> : vector<8x128xf32>
    %28 = tpu.matmul %25, %26, %cst_9 {dimension_numbers = #tpu.dot_dimension_numbers<[1], [0], [0], [1], [0, 0, 1, 1], [], []>} : vector<8x8xf32>, vector<8x128xf32>, vector<8x128xf32> -> vector<8x128xf32>
    %29 = tpu.concatenate %28, %26 in 1 : vector<8x128xf32>, vector<8x128xf32> -> vector<8x256xf32>
    %c0_10 = arith.constant 0 : index
    %c0_11 = arith.constant 0 : index
    %30 = vector.load %arg4[%c0_10, %c0_11] : memref<1408x128xf32, #tpu.memory_space<vmem>>, vector<256x128xf32>
    %cst_12 = arith.constant dense<0.000000e+00> : vector<8x128xf32>
    %31 = tpu.matmul %29, %30, %cst_12 {dimension_numbers = #tpu.dot_dimension_numbers<[1], [0], [0], [1], [0, 0, 1, 1], [], []>} : vector<8x256xf32>, vector<256x128xf32>, vector<8x128xf32> -> vector<8x128xf32>
    %32 = vector.extract_strided_slice %27 {offsets = [0, 0], sizes = [1, 128], strides = [1, 1]} : vector<8x128xf32> to vector<1x128xf32>
    %33 = vector.broadcast %32 : vector<1x128xf32> to vector<8x128xf32>
    %34 = arith.addf %31, %33 : vector<8x128xf32>
    %cst_13 = arith.constant 0.000000e+00 : f32
    %35 = vector.broadcast %cst_13 : f32 to vector<8x128xf32>
    %36 = arith.maximumf %34, %35 : vector<8x128xf32>
    %cst_14 = arith.constant dense<0.000000e+00> : vector<8x128xf32>
    %37 = tpu.matmul %25, %36, %cst_14 {dimension_numbers = #tpu.dot_dimension_numbers<[1], [0], [0], [1], [0, 0, 1, 1], [], []>} : vector<8x8xf32>, vector<8x128xf32>, vector<8x128xf32> -> vector<8x128xf32>
    %38 = tpu.concatenate %37, %36 in 1 : vector<8x128xf32>, vector<8x128xf32> -> vector<8x256xf32>
    %c256 = arith.constant 256 : index
    %c0_15 = arith.constant 0 : index
    %39 = vector.load %arg4[%c256, %c0_15] : memref<1408x128xf32, #tpu.memory_space<vmem>>, vector<256x128xf32>
    %cst_16 = arith.constant dense<0.000000e+00> : vector<8x128xf32>
    %40 = tpu.matmul %38, %39, %cst_16 {dimension_numbers = #tpu.dot_dimension_numbers<[1], [0], [0], [1], [0, 0, 1, 1], [], []>} : vector<8x256xf32>, vector<256x128xf32>, vector<8x128xf32> -> vector<8x128xf32>
    %41 = vector.extract_strided_slice %27 {offsets = [1, 0], sizes = [1, 128], strides = [1, 1]} : vector<8x128xf32> to vector<1x128xf32>
    %42 = vector.broadcast %41 : vector<1x128xf32> to vector<8x128xf32>
    %43 = arith.addf %40, %42 : vector<8x128xf32>
    %cst_17 = arith.constant 0.000000e+00 : f32
    %44 = vector.broadcast %cst_17 : f32 to vector<8x128xf32>
    %45 = arith.maximumf %43, %44 : vector<8x128xf32>
    %cst_18 = arith.constant dense<0.000000e+00> : vector<16x128xf32>
    %46 = tpu.matmul %8, %45, %cst_18 {dimension_numbers = #tpu.dot_dimension_numbers<[1], [0], [0], [1], [0, 0, 1, 1], [], []>} : vector<16x8xf32>, vector<8x128xf32>, vector<16x128xf32> -> vector<16x128xf32>
    %cst_19 = arith.constant dense<0.000000e+00> : vector<16x128xf32>
    %47 = tpu.matmul %13, %45, %cst_19 {dimension_numbers = #tpu.dot_dimension_numbers<[1], [0], [0], [1], [0, 0, 1, 1], [], []>} : vector<16x8xf32>, vector<8x128xf32>, vector<16x128xf32> -> vector<16x128xf32>
    %48 = tpu.concatenate %46, %47 in 1 : vector<16x128xf32>, vector<16x128xf32> -> vector<16x256xf32>
    %c512 = arith.constant 512 : index
    %c0_20 = arith.constant 0 : index
    %49 = vector.load %arg4[%c512, %c0_20] : memref<1408x128xf32, #tpu.memory_space<vmem>>, vector<256x128xf32>
    %cst_21 = arith.constant dense<0.000000e+00> : vector<16x128xf32>
    %50 = tpu.matmul %48, %49, %cst_21 {dimension_numbers = #tpu.dot_dimension_numbers<[1], [0], [0], [1], [0, 0, 1, 1], [], []>} : vector<16x256xf32>, vector<256x128xf32>, vector<16x128xf32> -> vector<16x128xf32>
    %51 = vector.extract_strided_slice %27 {offsets = [2, 0], sizes = [1, 128], strides = [1, 1]} : vector<8x128xf32> to vector<1x128xf32>
    %52 = vector.broadcast %51 : vector<1x128xf32> to vector<16x128xf32>
    %53 = arith.addf %50, %52 : vector<16x128xf32>
    %cst_22 = arith.constant 0.000000e+00 : f32
    %54 = vector.broadcast %cst_22 : f32 to vector<16x128xf32>
    %55 = arith.maximumf %53, %54 : vector<16x128xf32>
    %c768 = arith.constant 768 : index
    %c0_23 = arith.constant 0 : index
    %56 = vector.load %arg4[%c768, %c0_23] : memref<1408x128xf32, #tpu.memory_space<vmem>>, vector<128x128xf32>
    %cst_24 = arith.constant dense<0.000000e+00> : vector<16x128xf32>
    %57 = tpu.matmul %55, %56, %cst_24 {dimension_numbers = #tpu.dot_dimension_numbers<[1], [0], [0], [1], [0, 0, 1, 1], [], []>} : vector<16x128xf32>, vector<128x128xf32>, vector<16x128xf32> -> vector<16x128xf32>
    %58 = vector.extract_strided_slice %27 {offsets = [3, 0], sizes = [1, 128], strides = [1, 1]} : vector<8x128xf32> to vector<1x128xf32>
    %59 = vector.broadcast %58 : vector<1x128xf32> to vector<16x128xf32>
    %60 = arith.addf %57, %59 : vector<16x128xf32>
    %cst_25 = arith.constant 0.000000e+00 : f32
    %61 = vector.broadcast %cst_25 : f32 to vector<16x128xf32>
    %62 = arith.maximumf %60, %61 : vector<16x128xf32>
    %c896 = arith.constant 896 : index
    %c0_26 = arith.constant 0 : index
    %63 = vector.load %arg4[%c896, %c0_26] : memref<1408x128xf32, #tpu.memory_space<vmem>>, vector<128x128xf32>
    %cst_27 = arith.constant dense<0.000000e+00> : vector<16x128xf32>
    %64 = tpu.matmul %62, %63, %cst_27 {dimension_numbers = #tpu.dot_dimension_numbers<[1], [0], [0], [1], [0, 0, 1, 1], [], []>} : vector<16x128xf32>, vector<128x128xf32>, vector<16x128xf32> -> vector<16x128xf32>
    %65 = vector.extract_strided_slice %27 {offsets = [4, 0], sizes = [1, 128], strides = [1, 1]} : vector<8x128xf32> to vector<1x128xf32>
    %66 = vector.broadcast %65 : vector<1x128xf32> to vector<16x128xf32>
    %67 = arith.addf %64, %66 : vector<16x128xf32>
    %cst_28 = arith.constant 0.000000e+00 : f32
    %68 = vector.broadcast %cst_28 : f32 to vector<16x128xf32>
    %69 = arith.maximumf %67, %68 : vector<16x128xf32>
    %c1024 = arith.constant 1024 : index
    %c0_29 = arith.constant 0 : index
    %70 = vector.load %arg4[%c1024, %c0_29] : memref<1408x128xf32, #tpu.memory_space<vmem>>, vector<128x128xf32>
    %cst_30 = arith.constant dense<0.000000e+00> : vector<16x128xf32>
    %71 = tpu.matmul %69, %70, %cst_30 {dimension_numbers = #tpu.dot_dimension_numbers<[1], [0], [0], [1], [0, 0, 1, 1], [], []>} : vector<16x128xf32>, vector<128x128xf32>, vector<16x128xf32> -> vector<16x128xf32>
    %72 = vector.extract_strided_slice %27 {offsets = [5, 0], sizes = [1, 128], strides = [1, 1]} : vector<8x128xf32> to vector<1x128xf32>
    %73 = vector.broadcast %72 : vector<1x128xf32> to vector<16x128xf32>
    %74 = arith.addf %71, %73 : vector<16x128xf32>
    %cst_31 = arith.constant 0.000000e+00 : f32
    %75 = vector.broadcast %cst_31 : f32 to vector<16x128xf32>
    %76 = arith.maximumf %74, %75 : vector<16x128xf32>
    %c1152 = arith.constant 1152 : index
    %c0_32 = arith.constant 0 : index
    %77 = vector.load %arg4[%c1152, %c0_32] : memref<1408x128xf32, #tpu.memory_space<vmem>>, vector<128x128xf32>
    %cst_33 = arith.constant dense<0.000000e+00> : vector<16x128xf32>
    %78 = tpu.matmul %76, %77, %cst_33 {dimension_numbers = #tpu.dot_dimension_numbers<[1], [0], [0], [1], [0, 0, 1, 1], [], []>} : vector<16x128xf32>, vector<128x128xf32>, vector<16x128xf32> -> vector<16x128xf32>
    %79 = vector.extract_strided_slice %27 {offsets = [6, 0], sizes = [1, 128], strides = [1, 1]} : vector<8x128xf32> to vector<1x128xf32>
    %80 = vector.broadcast %79 : vector<1x128xf32> to vector<16x128xf32>
    %81 = arith.addf %78, %80 : vector<16x128xf32>
    %cst_34 = arith.constant 0.000000e+00 : f32
    %82 = vector.broadcast %cst_34 : f32 to vector<16x128xf32>
    %83 = arith.maximumf %81, %82 : vector<16x128xf32>
    %c1280 = arith.constant 1280 : index
    %c0_35 = arith.constant 0 : index
    %84 = vector.load %arg4[%c1280, %c0_35] : memref<1408x128xf32, #tpu.memory_space<vmem>>, vector<128x128xf32>
    %cst_36 = arith.constant dense<0.000000e+00> : vector<16x128xf32>
    %85 = tpu.matmul %83, %84, %cst_36 {dimension_numbers = #tpu.dot_dimension_numbers<[1], [0], [0], [1], [0, 0, 1, 1], [], []>} : vector<16x128xf32>, vector<128x128xf32>, vector<16x128xf32> -> vector<16x128xf32>
    %86 = vector.extract_strided_slice %27 {offsets = [7, 0], sizes = [1, 128], strides = [1, 1]} : vector<8x128xf32> to vector<1x128xf32>
    %87 = vector.broadcast %86 : vector<1x128xf32> to vector<16x128xf32>
    %88 = arith.addf %85, %87 : vector<16x128xf32>
    %c0_37 = arith.constant 0 : index
    %c0_38 = arith.constant 0 : index
    %89 = vector.load %arg6[%c0_37, %c0_38] : memref<16x128xf32, #tpu.memory_space<vmem>>, vector<16x128xf32>
    tpu.vector_store %arg6[%c0_37, %c0_38], %88 {strides = array<i32>} : memref<16x128xf32, #tpu.memory_space<vmem>>, vector<16x128xf32>,
    return
  }
  func.func @transform_0(%arg0: i32) -> (i32, i32) {
    %c0_i32 = arith.constant 0 : i32
    %c0_i32_0 = arith.constant 0 : i32
    %c0_i32_1 = arith.constant 0 : i32
    return %c0_i32, %c0_i32_0 : i32, i32
  }
  func.func @transform_1(%arg0: i32) -> (i32, i32) {
    %c0_i32 = arith.constant 0 : i32
    %c0_i32_0 = arith.constant 0 : i32
    %c0_i32_1 = arith.constant 0 : i32
    return %c0_i32, %c0_i32_0 : i32, i32
  }
  func.func @transform_2(%arg0: i32) -> (i32, i32) {
    %c0_i32 = arith.constant 0 : i32
    %c0_i32_0 = arith.constant 0 : i32
    %c0_i32_1 = arith.constant 0 : i32
    return %c0_i32, %c0_i32_0 : i32, i32
  }
  func.func @transform_3(%arg0: i32) -> (i32, i32) {
    %c0_i32 = arith.constant 0 : i32
    %c0_i32_0 = arith.constant 0 : i32
    %c0_i32_1 = arith.constant 0 : i32
    return %c0_i32, %c0_i32_0 : i32, i32
  }
  func.func @transform_4(%arg0: i32) -> (i32, i32) {
    %c0_i32 = arith.constant 0 : i32
    %c0_i32_0 = arith.constant 0 : i32
    %c0_i32_1 = arith.constant 0 : i32
    return %c0_i32, %c0_i32_0 : i32, i32
  }
  func.func @transform_5(%arg0: i32) -> (i32, i32) {
    %c0_i32 = arith.constant 0 : i32
    %c0_i32_0 = arith.constant 0 : i32
    %c0_i32_1 = arith.constant 0 : i32
    return %c0_i32, %c0_i32_0 : i32, i32
  }
}

</mosaic_0001>

<llo_original>
// kernel: scene_graph_forward.1
$region0: #{scene_graph_forward.1}
  #allocation0 [shape = 'u32[]', space=smem, size = 0x4, offset = 0x4, fixed_abs, tag = 'smem constant byte address 0x4 - core index']
  #allocation1 [shape = 'u32[144,128]{1,0:T(1,128)}', space=vmem, size = 0x12000, scoped, tag = 'internal scratch']
  %s0 = inlined_call_operand.vmem [shape: f32[8,128], index: 0, kind: input, shape index: {}]
  %s1 = inlined_call_operand.vmem [shape: s32[16,2], index: 1, kind: input, shape index: {}]
  %s2 = inlined_call_operand.vmem [shape: s32[2,16], index: 2, kind: input, shape index: {}]
  %s3 = inlined_call_operand.hbm [shape: f32[1408,128], index: 3, kind: input, shape index: {}]
  %s4 = inlined_call_operand.vmem [shape: f32[8,128], index: 4, kind: input, shape index: {}]
  %s5 = inlined_call_operand.vmem [shape: f32[16,128], index: 5, kind: output, shape index: {}]
  %s6 = sld [smem:[#allocation0]]
  $region34: #{scene_graph_forward.1} parent=0
    _
  %s8 = ssub.s32 1, %s6
  %s9 = scalar_select 0, %s8, %s6
  $region1: #{scene_graph_forward.1} parent=0
    #allocation2 [shape = 'u8[720896]{0}', space=vmem, size = 0xb0000, scoped, tag = 'input window, operand 3, single buffered']
    #allocation3 [shape = 's32[1]{0}', space=sflag, size = 0x4, scoped, tag = 'scoped memory for scene_graph_forward.1']
    %10 = vsyncpa [#allocation3], 0
    // Predicated region
    $region2: #{scene_graph_forward.1} parent=1 // pred_check
      _
    $region3: #{scene_graph_forward.1} parent=1 // pred_check_branch
      %12 = sbr.rel (0) target = $region5
    $region4: #{scene_graph_forward.1} parent=1 // pred_region
      _
    $region5: #{scene_graph_forward.1} parent=1 // pred_fallthru
      _
    // Predicated region
    $region6: #{scene_graph_forward.1} parent=1 // pred_check
      _
    $region7: #{scene_graph_forward.1} parent=1 // pred_check_branch
      %14 = sbr.rel (0) target = $region9
    $region8: #{scene_graph_forward.1} parent=1 // pred_region
      _
    $region9: #{scene_graph_forward.1} parent=1 // pred_fallthru
      _
    // Predicated region
    $region10: #{scene_graph_forward.1} parent=1 // pred_check
      _
    $region11: #{scene_graph_forward.1} parent=1 // pred_check_branch
      %16 = sbr.rel (0) target = $region13
    $region12: #{scene_graph_forward.1} parent=1 // pred_region
      _
    $region13: #{scene_graph_forward.1} parent=1 // pred_fallthru
      _
    // Predicated region
    $region14: #{scene_graph_forward.1} parent=1 // pred_check
      _
    $region15: #{scene_graph_forward.1} parent=1 // pred_check_branch
      %18 = sbr.rel (0) target = $region17
    $region16: #{scene_graph_forward.1} parent=1 // pred_region
      %s20 = ssub.s32 22528, 22528
      %21 = vsyncadd [#allocation3], %s20
      %s22 = sshll.u32 [#allocation2], 4
      %s23 = int_to_ptr.vmem [resolvable:$true] %s22
      %28 = dma.hbm_to_vmem [thread:$0]  %s3, 22528, %s23, [#allocation3], 128, 128, 8
    $region17: #{scene_graph_forward.1} parent=1 // pred_fallthru
      _
    // Predicated region
    $region18: #{scene_graph_forward.1} parent=1 // pred_check
      _
    $region19: #{scene_graph_forward.1} parent=1 // pred_check_branch
      %30 = sbr.rel (0) target = $region21
    $region20: #{scene_graph_forward.1} parent=1 // pred_region
      _
    $region21: #{scene_graph_forward.1} parent=1 // pred_fallthru
      _
    // Predicated region
    $region22: #{scene_graph_forward.1} parent=1 // pred_check
      _
    $region23: #{scene_graph_forward.1} parent=1 // pred_check_branch
      %32 = sbr.rel (0) target = $region25
    $region24: #{scene_graph_forward.1} parent=1 // pred_region
      %33 = dma.done [#allocation3], 22528
    $region25: #{scene_graph_forward.1} parent=1 // pred_fallthru
      _
    %v34 = vld [vmem:[%s1] sm:$0xff]
    %v35 = vld [vmem:[%s1 + $0x8] sm:$0xff]
    %v36 = vld [vmem:[%s2] sm:$0x3]
    %v37 = vlaneseq
    %v38 = vand.u32 %v37, 127
    %v39 = vlaneseq
    %v40 = vshrl.u32 %v39, 7
    %41 = vset.pattern.permute.xlu0 0
    %42 = vperm.xlu0 %41, %v34
    %v43 = vpop.permute.xlu0 %42
    %44 = vset.pattern.permute.xlu0 0
    %45 = vperm.xlu0 %44, %v35
    %v46 = vpop.permute.xlu0 %45
    %vm47 = vcmp.eq.s32.totalorder %v38, %v43
    %vm48 = vcmp.eq.s32.totalorder %v38, %v46
    %v49 = vsel %vm47, 1, 0
    %v50 = vsel %vm48, 1, 0
    %v51 = vcvt.s32.f32 %v49
    %v52 = vcvt.s32.f32 %v50
    %53 = vset.pattern.permute.xlu0 1
    %54 = vperm.xlu0 %53, %v34
    %v55 = vpop.permute.xlu0 %54
    %56 = vset.pattern.permute.xlu0 1
    %57 = vperm.xlu0 %56, %v35
    %v58 = vpop.permute.xlu0 %57
    %vm59 = vcmp.eq.s32.totalorder %v38, %v55
    %vm60 = vcmp.eq.s32.totalorder %v38, %v58
    %v61 = vsel %vm59, 1, 0
    %v62 = vsel %vm60, 1, 0
    %v63 = vcvt.s32.f32 %v61
    %v64 = vcvt.s32.f32 %v62
    %v65 = vlaneseq
    %v66 = vshrl.u32 %v65, 7
    %v67 = vsub.s32 1, %v66
    %v68 = vrot.slane %v36, %v67
    %vm69 = vcmp.eq.s32.totalorder %v40, %v68
    %v70 = vsel %vm69, 1, 0
    %v71 = vcvt.s32.f32 %v70
    %vm72 = vcmask 130048
    %v74 = vsel %vm72, %v71, 0
    %76 = vmatprep.subr.mxu0 0.0
    %77 = vmatpush1.msra.mxu0 %v51
    %78 = vmatprep.subr.mxu0 0.0
    %79 = vmatpush1.msra.mxu0 %v52
    %80 = vmatprep.subr.mxu0 0.0
    %81 = vmatpush1.msra.mxu0 0.0
    %82 = vmatprep.subr.mxu0 0.0
    %83 = vmatpush1.msra.mxu0 0.0
    %84 = vmatprep.subr.mxu0 0.0
    %85 = vmatpush1.msra.mxu0 0.0
    %86 = vmatprep.subr.mxu0 0.0
    %87 = vmatpush1.msra.mxu0 0.0
    %88 = vmatprep.subr.mxu0 0.0
    %89 = vmatpush1.msra.mxu0 0.0
    %90 = vmatprep.subr.mxu0 0.0
    %91 = vmatpush1.msra.mxu0 0.0
    %92 = vmatprep.subr.mxu0 0.0
    %93 = vmatpush1.msra.mxu0 0.0
    %94 = vmatprep.subr.mxu0 0.0
    %95 = vmatpush1.msra.mxu0 0.0
    %96 = vmatprep.subr.mxu0 0.0
    %97 = vmatpush1.msra.mxu0 0.0
    %98 = vmatprep.subr.mxu0 0.0
    %99 = vmatpush1.msra.mxu0 0.0
    %100 = vmatprep.subr.mxu0 0.0
    %101 = vmatpush1.msra.mxu0 0.0
    %102 = vmatprep.subr.mxu0 0.0
    %103 = vmatpush1.msra.mxu0 0.0
    %104 = vmatprep.subr.mxu0 0.0
    %105 = vmatpush1.msra.mxu0 0.0
    %106 = vmatprep.subr.mxu0 0.0
    %107 = vmatpush1.msra.mxu0 0.0
    %108 = vmatprep.subr.mxu0 0.0
    %109 = vmatpush1.msra.mxu0 0.0
    %110 = vmatprep.subr.mxu0 0.0
    %111 = vmatpush1.msra.mxu0 0.0
    %112 = vmatprep.subr.mxu0 0.0
    %113 = vmatpush1.msra.mxu0 0.0
    %114 = vmatprep.subr.mxu0 0.0
    %115 = vmatpush1.msra.mxu0 0.0
    %116 = vmatprep.subr.mxu0 0.0
    %117 = vmatpush1.msra.mxu0 0.0
    %118 = vmatprep.subr.mxu0 0.0
    %119 = vmatpush1.msra.mxu0 0.0
    %120 = vmatprep.subr.mxu0 0.0
    %121 = vmatpush1.msra.mxu0 0.0
    %122 = vmatprep.subr.mxu0 0.0
    %123 = vmatpush1.msra.mxu0 0.0
    %124 = vmatprep.subr.mxu0 0.0
    %125 = vmatpush1.msra.mxu0 0.0
    %126 = vmatprep.subr.mxu0 0.0
    %127 = vmatpush1.msra.mxu0 0.0
    %128 = vmatprep.subr.mxu0 0.0
    %129 = vmatpush1.msra.mxu0 0.0
    %130 = vmatprep.subr.mxu0 0.0
    %131 = vmatpush1.msra.mxu0 0.0
    %132 = vmatprep.subr.mxu0 0.0
    %133 = vmatpush1.msra.mxu0 0.0
    %134 = vmatprep.subr.mxu0 0.0
    %135 = vmatpush1.msra.mxu0 0.0
    %136 = vmatprep.subr.mxu0 0.0
    %137 = vmatpush1.msra.mxu0 0.0
    %138 = vmatprep.subr.mxu0 0.0
    %139 = vmatpush1.msra.mxu0 0.0
    %140 = vmatprep.mubr.f32.mxu0 0.0
    %141 = vmatmul.mubr.f32.gmra.mrb[0].mxu0 %v74
    %v142 = vpop.f32.mrb[0].mxu0
    %v143 = vadd.f32 0.0, %v142
    %v144 = vpop.f32.mrb[0].mxu0
    %145 = vdwg.mxu0
    %vm146 = vcmask 64512
    %v147 = vsel %vm146, %v143, 0.0
    %148 = vadd.xlane.f32.xlu0 %v147
    %v149 = vpop.xlane.xlu0 %148
    %v150 = vmax.f32 %v149, 1.0
    %v151 = vrcp.pop %v150
    %v152 = vmul.f32 %v143, %v151
    %v153 = vld [vmem:[%s0] sm:$0xff]
    %v154 = vld [vmem:[%s4] sm:$0xff]
    %v156 = vsel %vm146, %v152, 0
    %158 = vmatprep.subr.mxu0 0.0
    %159 = vmatpush1.msra.mxu0 %v153
    %160 = vmatprep.subr.mxu0 0.0
    %161 = vmatpush1.msra.mxu0 0.0
    %162 = vmatprep.subr.mxu0 0.0
    %163 = vmatpush1.msra.mxu0 0.0
    %164 = vmatprep.subr.mxu0 0.0
    %165 = vmatpush1.msra.mxu0 0.0
    %166 = vmatprep.subr.mxu0 0.0
    %167 = vmatpush1.msra.mxu0 0.0
    %168 = vmatprep.subr.mxu0 0.0
    %169 = vmatpush1.msra.mxu0 0.0
    %170 = vmatprep.subr.mxu0 0.0
    %171 = vmatpush1.msra.mxu0 0.0
    %172 = vmatprep.subr.mxu0 0.0
    %173 = vmatpush1.msra.mxu0 0.0
    %174 = vmatprep.subr.mxu0 0.0
    %175 = vmatpush1.msra.mxu0 0.0
    %176 = vmatprep.subr.mxu0 0.0
    %177 = vmatpush1.msra.mxu0 0.0
    %178 = vmatprep.subr.mxu0 0.0
    %179 = vmatpush1.msra.mxu0 0.0
    %180 = vmatprep.subr.mxu0 0.0
    %181 = vmatpush1.msra.mxu0 0.0
    %182 = vmatprep.subr.mxu0 0.0
    %183 = vmatpush1.msra.mxu0 0.0
    %184 = vmatprep.subr.mxu0 0.0
    %185 = vmatpush1.msra.mxu0 0.0
    %186 = vmatprep.subr.mxu0 0.0
    %187 = vmatpush1.msra.mxu0 0.0
    %188 = vmatprep.subr.mxu0 0.0
    %189 = vmatpush1.msra.mxu0 0.0
    %190 = vmatprep.subr.mxu0 0.0
    %191 = vmatpush1.msra.mxu0 0.0
    %192 = vmatprep.subr.mxu0 0.0
    %193 = vmatpush1.msra.mxu0 0.0
    %194 = vmatprep.subr.mxu0 0.0
    %195 = vmatpush1.msra.mxu0 0.0
    %196 = vmatprep.subr.mxu0 0.0
    %197 = vmatpush1.msra.mxu0 0.0
    %198 = vmatprep.subr.mxu0 0.0
    %199 = vmatpush1.msra.mxu0 0.0
    %200 = vmatprep.subr.mxu0 0.0
    %201 = vmatpush1.msra.mxu0 0.0
    %202 = vmatprep.subr.mxu0 0.0
    %203 = vmatpush1.msra.mxu0 0.0
    %204 = vmatprep.subr.mxu0 0.0
    %205 = vmatpush1.msra.mxu0 0.0
    %206 = vmatprep.subr.mxu0 0.0
    %207 = vmatpush1.msra.mxu0 0.0
    %208 = vmatprep.subr.mxu0 0.0
    %209 = vmatpush1.msra.mxu0 0.0
    %210 = vmatprep.subr.mxu0 0.0
    %211 = vmatpush1.msra.mxu0 0.0
    %212 = vmatprep.subr.mxu0 0.0
    %213 = vmatpush1.msra.mxu0 0.0
    %214 = vmatprep.subr.mxu0 0.0
    %215 = vmatpush1.msra.mxu0 0.0
    %216 = vmatprep.subr.mxu0 0.0
    %217 = vmatpush1.msra.mxu0 0.0
    %218 = vmatprep.subr.mxu0 0.0
    %219 = vmatpush1.msra.mxu0 0.0
    %220 = vmatprep.subr.mxu0 0.0
    %221 = vmatpush1.msra.mxu0 0.0
    %222 = vmatprep.mubr.f32.mxu0 0.0
    %223 = vmatmul.mubr.f32.gmra.mrb[0].mxu0 %v156
    %v224 = vpop.f32.mrb[0].mxu0
    %v225 = vadd.f32 0.0, %v224
    %v226 = vpop.f32.mrb[0].mxu0
    %227 = vdwg.mxu0
    %v228 = vld [vmem:[#allocation2] sm:$0xff]
    %v229 = vld [vmem:[#allocation2 + $0x8] sm:$0xff]
    %v230 = vld [vmem:[#allocation2 + $0x10] sm:$0xff]
    %v231 = vld [vmem:[#allocation2 + $0x18] sm:$0xff]
    %v232 = vld [vmem:[#allocation2 + $0x20] sm:$0xff]
    %v233 = vld [vmem:[#allocation2 + $0x28] sm:$0xff]
    %v234 = vld [vmem:[#allocation2 + $0x30] sm:$0xff]
    %v235 = vld [vmem:[#allocation2 + $0x38] sm:$0xff]
    %v236 = vld [vmem:[#allocation2 + $0x40] sm:$0xff]
    %v237 = vld [vmem:[#allocation2 + $0x48] sm:$0xff]
    %v238 = vld [vmem:[#allocation2 + $0x50] sm:$0xff]
    %v239 = vld [vmem:[#allocation2 + $0x58] sm:$0xff]
    %v240 = vld [vmem:[#allocation2 + $0x60] sm:$0xff]
    %v241 = vld [vmem:[#allocation2 + $0x68] sm:$0xff]
    %v242 = vld [vmem:[#allocation2 + $0x70] sm:$0xff]
    %v243 = vld [vmem:[#allocation2 + $0x78] sm:$0xff]
    %v244 = vld [vmem:[#allocation2 + $0x80] sm:$0xff]
    %v245 = vld [vmem:[#allocation2 + $0x88] sm:$0xff]
    %v246 = vld [vmem:[#allocation2 + $0x90] sm:$0xff]
    %v247 = vld [vmem:[#allocation2 + $0x98] sm:$0xff]
    %v248 = vld [vmem:[#allocation2 + $0xa0] sm:$0xff]
    %v249 = vld [vmem:[#allocation2 + $0xa8] sm:$0xff]
    %v250 = vld [vmem:[#allocation2 + $0xb0] sm:$0xff]
    %v251 = vld [vmem:[#allocation2 + $0xb8] sm:$0xff]
    %v252 = vld [vmem:[#allocation2 + $0xc0] sm:$0xff]
    %v253 = vld [vmem:[#allocation2 + $0xc8] sm:$0xff]
    %v254 = vld [vmem:[#allocation2 + $0xd0] sm:$0xff]
    %v255 = vld [vmem:[#allocation2 + $0xd8] sm:$0xff]
    %v256 = vld [vmem:[#allocation2 + $0xe0] sm:$0xff]
    %v257 = vld [vmem:[#allocation2 + $0xe8] sm:$0xff]
    %v258 = vld [vmem:[#allocation2 + $0xf0] sm:$0xff]
    %v259 = vld [vmem:[#allocation2 + $0xf8] sm:$0xff]
    %v260 = vlaneseq
    %v261 = vshrl.u32 %v260, 7
    %v262 = vsub.s32 0, %v261
    %v263 = vrot.slane %v154, %v262
    %264 = vmatprep.subr.mxu0 0.0
    %265 = vmatpush1.msra.mxu0 %v228
    %266 = vmatprep.subr.mxu0 0.0
    %267 = vmatpush1.msra.mxu0 %v229
    %268 = vmatprep.subr.mxu0 0.0
    %269 = vmatpush1.msra.mxu0 %v230
    %270 = vmatprep.subr.mxu0 0.0
    %271 = vmatpush1.msra.mxu0 %v231
    %272 = vmatprep.subr.mxu0 0.0
    %273 = vmatpush1.msra.mxu0 %v232
    %274 = vmatprep.subr.mxu0 0.0
    %275 = vmatpush1.msra.mxu0 %v233
    %276 = vmatprep.subr.mxu0 0.0
    %277 = vmatpush1.msra.mxu0 %v234
    %278 = vmatprep.subr.mxu0 0.0
    %279 = vmatpush1.msra.mxu0 %v235
    %280 = vmatprep.subr.mxu0 0.0
    %281 = vmatpush1.msra.mxu0 %v236
    %282 = vmatprep.subr.mxu0 0.0
    %283 = vmatpush1.msra.mxu0 %v237
    %284 = vmatprep.subr.mxu0 0.0
    %285 = vmatpush1.msra.mxu0 %v238
    %286 = vmatprep.subr.mxu0 0.0
    %287 = vmatpush1.msra.mxu0 %v239
    %288 = vmatprep.subr.mxu0 0.0
    %289 = vmatpush1.msra.mxu0 %v240
    %290 = vmatprep.subr.mxu0 0.0
    %291 = vmatpush1.msra.mxu0 %v241
    %292 = vmatprep.subr.mxu0 0.0
    %293 = vmatpush1.msra.mxu0 %v242
    %294 = vmatprep.subr.mxu0 0.0
    %295 = vmatpush1.msra.mxu0 %v243
    %296 = vmatprep.subr.mxu0 0.0
    %297 = vmatpush1.msra.mxu0 %v244
    %298 = vmatprep.subr.mxu0 0.0
    %299 = vmatpush1.msra.mxu0 %v245
    %300 = vmatprep.subr.mxu0 0.0
    %301 = vmatpush1.msra.mxu0 %v246
    %302 = vmatprep.subr.mxu0 0.0
    %303 = vmatpush1.msra.mxu0 %v247
    %304 = vmatprep.subr.mxu0 0.0
    %305 = vmatpush1.msra.mxu0 %v248
    %306 = vmatprep.subr.mxu0 0.0
    %307 = vmatpush1.msra.mxu0 %v249
    %308 = vmatprep.subr.mxu0 0.0
    %309 = vmatpush1.msra.mxu0 %v250
    %310 = vmatprep.subr.mxu0 0.0
    %311 = vmatpush1.msra.mxu0 %v251
    %312 = vmatprep.subr.mxu0 0.0
    %313 = vmatpush1.msra.mxu0 %v252
    %314 = vmatprep.subr.mxu0 0.0
    %315 = vmatpush1.msra.mxu0 %v253
    %316 = vmatprep.subr.mxu0 0.0
    %317 = vmatpush1.msra.mxu0 %v254
    %318 = vmatprep.subr.mxu0 0.0
    %319 = vmatpush1.msra.mxu0 %v255
    %320 = vmatprep.subr.mxu0 0.0
    %321 = vmatpush1.msra.mxu0 %v256
    %322 = vmatprep.subr.mxu0 0.0
    %323 = vmatpush1.msra.mxu0 %v257
    %324 = vmatprep.subr.mxu0 0.0
    %325 = vmatpush1.msra.mxu0 %v258
    %326 = vmatprep.subr.mxu0 0.0
    %327 = vmatpush1.msra.mxu0 %v259
    %328 = vmatprep.mubr.f32.mxu0 %v153
    %329 = vmatmul.mubr.f32.gmra.mrb[0].mxu0 %v225
    %v330 = vpop.f32.mrb[0].mxu0
    %v331 = vadd.f32 %v263, %v330
    %v332 = vpop.f32.mrb[0].mxu0
    %333 = vdwg.mxu0
    %v334 = vmax.f32 %v331, 0.0
    %335 = vmatprep.subr.mxu0 0.0
    %336 = vmatpush1.msra.mxu0 %v334
    %337 = vmatprep.subr.mxu0 0.0
    %338 = vmatpush1.msra.mxu0 0.0
    %339 = vmatprep.subr.mxu0 0.0
    %340 = vmatpush1.msra.mxu0 0.0
    %341 = vmatprep.subr.mxu0 0.0
    %342 = vmatpush1.msra.mxu0 0.0
    %343 = vmatprep.subr.mxu0 0.0
    %344 = vmatpush1.msra.mxu0 0.0
    %345 = vmatprep.subr.mxu0 0.0
    %346 = vmatpush1.msra.mxu0 0.0
    %347 = vmatprep.subr.mxu0 0.0
    %348 = vmatpush1.msra.mxu0 0.0
    %349 = vmatprep.subr.mxu0 0.0
    %350 = vmatpush1.msra.mxu0 0.0
    %351 = vmatprep.subr.mxu0 0.0
    %352 = vmatpush1.msra.mxu0 0.0
    %353 = vmatprep.subr.mxu0 0.0
    %354 = vmatpush1.msra.mxu0 0.0
    %355 = vmatprep.subr.mxu0 0.0
    %356 = vmatpush1.msra.mxu0 0.0
    %357 = vmatprep.subr.mxu0 0.0
    %358 = vmatpush1.msra.mxu0 0.0
    %359 = vmatprep.subr.mxu0 0.0
    %360 = vmatpush1.msra.mxu0 0.0
    %361 = vmatprep.subr.mxu0 0.0
    %362 = vmatpush1.msra.mxu0 0.0
    %363 = vmatprep.subr.mxu0 0.0
    %364 = vmatpush1.msra.mxu0 0.0
    %365 = vmatprep.subr.mxu0 0.0
    %366 = vmatpush1.msra.mxu0 0.0
    %367 = vmatprep.subr.mxu0 0.0
    %368 = vmatpush1.msra.mxu0 0.0
    %369 = vmatprep.subr.mxu0 0.0
    %370 = vmatpush1.msra.mxu0 0.0
    %371 = vmatprep.subr.mxu0 0.0
    %372 = vmatpush1.msra.mxu0 0.0
    %373 = vmatprep.subr.mxu0 0.0
    %374 = vmatpush1.msra.mxu0 0.0
    %375 = vmatprep.subr.mxu0 0.0
    %376 = vmatpush1.msra.mxu0 0.0
    %377 = vmatprep.subr.mxu0 0.0
    %378 = vmatpush1.msra.mxu0 0.0
    %379 = vmatprep.subr.mxu0 0.0
    %380 = vmatpush1.msra.mxu0 0.0
    %381 = vmatprep.subr.mxu0 0.0
    %382 = vmatpush1.msra.mxu0 0.0
    %383 = vmatprep.subr.mxu0 0.0
    %384 = vmatpush1.msra.mxu0 0.0
    %385 = vmatprep.subr.mxu0 0.0
    %386 = vmatpush1.msra.mxu0 0.0
    %387 = vmatprep.subr.mxu0 0.0
    %388 = vmatpush1.msra.mxu0 0.0
    %389 = vmatprep.subr.mxu0 0.0
    %390 = vmatpush1.msra.mxu0 0.0
    %391 = vmatprep.subr.mxu0 0.0
    %392 = vmatpush1.msra.mxu0 0.0
    %393 = vmatprep.subr.mxu0 0.0
    %394 = vmatpush1.msra.mxu0 0.0
    %395 = vmatprep.subr.mxu0 0.0
    %396 = vmatpush1.msra.mxu0 0.0
    %397 = vmatprep.subr.mxu0 0.0
    %398 = vmatpush1.msra.mxu0 0.0
    %399 = vmatprep.mubr.f32.mxu0 0.0
    %400 = vmatmul.mubr.f32.gmra.mrb[0].mxu0 %v156
    %v401 = vpop.f32.mrb[0].mxu0
    %v402 = vadd.f32 0.0, %v401
    %v403 = vpop.f32.mrb[0].mxu0
    %404 = vdwg.mxu0
    %v405 = vld [vmem:[#allocation2 + $0x100] sm:$0xff]
    %v406 = vld [vmem:[#allocation2 + $0x108] sm:$0xff]
    %v407 = vld [vmem:[#allocation2 + $0x110] sm:$0xff]
    %v408 = vld [vmem:[#allocation2 + $0x118] sm:$0xff]
    %v409 = vld [vmem:[#allocation2 + $0x120] sm:$0xff]
    %v410 = vld [vmem:[#allocation2 + $0x128] sm:$0xff]
    %v411 = vld [vmem:[#allocation2 + $0x130] sm:$0xff]
    %v412 = vld [vmem:[#allocation2 + $0x138] sm:$0xff]
    %v413 = vld [vmem:[#allocation2 + $0x140] sm:$0xff]
    %v414 = vld [vmem:[#allocation2 + $0x148] sm:$0xff]
    %v415 = vld [vmem:[#allocation2 + $0x150] sm:$0xff]
    %v416 = vld [vmem:[#allocation2 + $0x158] sm:$0xff]
    %v417 = vld [vmem:[#allocation2 + $0x160] sm:$0xff]
    %v418 = vld [vmem:[#allocation2 + $0x168] sm:$0xff]
    %v419 = vld [vmem:[#allocation2 + $0x170] sm:$0xff]
    %v420 = vld [vmem:[#allocation2 + $0x178] sm:$0xff]
    %v421 = vld [vmem:[#allocation2 + $0x180] sm:$0xff]
    %v422 = vld [vmem:[#allocation2 + $0x188] sm:$0xff]
    %v423 = vld [vmem:[#allocation2 + $0x190] sm:$0xff]
    %v424 = vld [vmem:[#allocation2 + $0x198] sm:$0xff]
    %v425 = vld [vmem:[#allocation2 + $0x1a0] sm:$0xff]
    %v426 = vld [vmem:[#allocation2 + $0x1a8] sm:$0xff]
    %v427 = vld [vmem:[#allocation2 + $0x1b0] sm:$0xff]
    %v428 = vld [vmem:[#allocation2 + $0x1b8] sm:$0xff]
    %v429 = vld [vmem:[#allocation2 + $0x1c0] sm:$0xff]
    %v430 = vld [vmem:[#allocation2 + $0x1c8] sm:$0xff]
    %v431 = vld [vmem:[#allocation2 + $0x1d0] sm:$0xff]
    %v432 = vld [vmem:[#allocation2 + $0x1d8] sm:$0xff]
    %v433 = vld [vmem:[#allocation2 + $0x1e0] sm:$0xff]
    %v434 = vld [vmem:[#allocation2 + $0x1e8] sm:$0xff]
    %v435 = vld [vmem:[#allocation2 + $0x1f0] sm:$0xff]
    %v436 = vld [vmem:[#allocation2 + $0x1f8] sm:$0xff]
    %v437 = vlaneseq
    %v438 = vshrl.u32 %v437, 7
    %v439 = vsub.s32 1, %v438
    %v440 = vrot.slane %v154, %v439
    %441 = vmatprep.subr.mxu0 0.0
    %442 = vmatpush1.msra.mxu0 %v405
    %443 = vmatprep.subr.mxu0 0.0
    %444 = vmatpush1.msra.mxu0 %v406
    %445 = vmatprep.subr.mxu0 0.0
    %446 = vmatpush1.msra.mxu0 %v407
    %447 = vmatprep.subr.mxu0 0.0
    %448 = vmatpush1.msra.mxu0 %v408
    %449 = vmatprep.subr.mxu0 0.0
    %450 = vmatpush1.msra.mxu0 %v409
    %451 = vmatprep.subr.mxu0 0.0
    %452 = vmatpush1.msra.mxu0 %v410
    %453 = vmatprep.subr.mxu0 0.0
    %454 = vmatpush1.msra.mxu0 %v411
    %455 = vmatprep.subr.mxu0 0.0
    %456 = vmatpush1.msra.mxu0 %v412
    %457 = vmatprep.subr.mxu0 0.0
    %458 = vmatpush1.msra.mxu0 %v413
    %459 = vmatprep.subr.mxu0 0.0
    %460 = vmatpush1.msra.mxu0 %v414
    %461 = vmatprep.subr.mxu0 0.0
    %462 = vmatpush1.msra.mxu0 %v415
    %463 = vmatprep.subr.mxu0 0.0
    %464 = vmatpush1.msra.mxu0 %v416
    %465 = vmatprep.subr.mxu0 0.0
    %466 = vmatpush1.msra.mxu0 %v417
    %467 = vmatprep.subr.mxu0 0.0
    %468 = vmatpush1.msra.mxu0 %v418
    %469 = vmatprep.subr.mxu0 0.0
    %470 = vmatpush1.msra.mxu0 %v419
    %471 = vmatprep.subr.mxu0 0.0
    %472 = vmatpush1.msra.mxu0 %v420
    %473 = vmatprep.subr.mxu0 0.0
    %474 = vmatpush1.msra.mxu0 %v421
    %475 = vmatprep.subr.mxu0 0.0
    %476 = vmatpush1.msra.mxu0 %v422
    %477 = vmatprep.subr.mxu0 0.0
    %478 = vmatpush1.msra.mxu0 %v423
    %479 = vmatprep.subr.mxu0 0.0
    %480 = vmatpush1.msra.mxu0 %v424
    %481 = vmatprep.subr.mxu0 0.0
    %482 = vmatpush1.msra.mxu0 %v425
    %483 = vmatprep.subr.mxu0 0.0
    %484 = vmatpush1.msra.mxu0 %v426
    %485 = vmatprep.subr.mxu0 0.0
    %486 = vmatpush1.msra.mxu0 %v427
    %487 = vmatprep.subr.mxu0 0.0
    %488 = vmatpush1.msra.mxu0 %v428
    %489 = vmatprep.subr.mxu0 0.0
    %490 = vmatpush1.msra.mxu0 %v429
    %491 = vmatprep.subr.mxu0 0.0
    %492 = vmatpush1.msra.mxu0 %v430
    %493 = vmatprep.subr.mxu0 0.0
    %494 = vmatpush1.msra.mxu0 %v431
    %495 = vmatprep.subr.mxu0 0.0
    %496 = vmatpush1.msra.mxu0 %v432
    %497 = vmatprep.subr.mxu0 0.0
    %498 = vmatpush1.msra.mxu0 %v433
    %499 = vmatprep.subr.mxu0 0.0
    %500 = vmatpush1.msra.mxu0 %v434
    %501 = vmatprep.subr.mxu0 0.0
    %502 = vmatpush1.msra.mxu0 %v435
    %503 = vmatprep.subr.mxu0 0.0
    %504 = vmatpush1.msra.mxu0 %v436
    %505 = vmatprep.mubr.f32.mxu0 %v334
    %506 = vmatmul.mubr.f32.gmra.mrb[0].mxu0 %v402
    %v507 = vpop.f32.mrb[0].mxu0
    %v508 = vadd.f32 %v440, %v507
    %v509 = vpop.f32.mrb[0].mxu0
    %510 = vdwg.mxu0
    %v511 = vmax.f32 %v508, 0.0
    %v513 = vsel %vm146, %v51, 0
    %v516 = vsel %vm146, %v52, 0
    %518 = vmatprep.subr.mxu0 0.0
    %519 = vmatpush1.msra.mxu0 %v511
    %520 = vmatprep.subr.mxu0 0.0
    %521 = vmatpush1.msra.mxu0 0.0
    %522 = vmatprep.subr.mxu0 0.0
    %523 = vmatpush1.msra.mxu0 0.0
    %524 = vmatprep.subr.mxu0 0.0
    %525 = vmatpush1.msra.mxu0 0.0
    %526 = vmatprep.subr.mxu0 0.0
    %527 = vmatpush1.msra.mxu0 0.0
    %528 = vmatprep.subr.mxu0 0.0
    %529 = vmatpush1.msra.mxu0 0.0
    %530 = vmatprep.subr.mxu0 0.0
    %531 = vmatpush1.msra.mxu0 0.0
    %532 = vmatprep.subr.mxu0 0.0
    %533 = vmatpush1.msra.mxu0 0.0
    %534 = vmatprep.subr.mxu0 0.0
    %535 = vmatpush1.msra.mxu0 0.0
    %536 = vmatprep.subr.mxu0 0.0
    %537 = vmatpush1.msra.mxu0 0.0
    %538 = vmatprep.subr.mxu0 0.0
    %539 = vmatpush1.msra.mxu0 0.0
    %540 = vmatprep.subr.mxu0 0.0
    %541 = vmatpush1.msra.mxu0 0.0
    %542 = vmatprep.subr.mxu0 0.0
    %543 = vmatpush1.msra.mxu0 0.0
    %544 = vmatprep.subr.mxu0 0.0
    %545 = vmatpush1.msra.mxu0 0.0
    %546 = vmatprep.subr.mxu0 0.0
    %547 = vmatpush1.msra.mxu0 0.0
    %548 = vmatprep.subr.mxu0 0.0
    %549 = vmatpush1.msra.mxu0 0.0
    %550 = vmatprep.subr.mxu0 0.0
    %551 = vmatpush1.msra.mxu0 0.0
    %552 = vmatprep.subr.mxu0 0.0
    %553 = vmatpush1.msra.mxu0 0.0
    %554 = vmatprep.subr.mxu0 0.0
    %555 = vmatpush1.msra.mxu0 0.0
    %556 = vmatprep.subr.mxu0 0.0
    %557 = vmatpush1.msra.mxu0 0.0
    %558 = vmatprep.subr.mxu0 0.0
    %559 = vmatpush1.msra.mxu0 0.0
    %560 = vmatprep.subr.mxu0 0.0
    %561 = vmatpush1.msra.mxu0 0.0
    %562 = vmatprep.subr.mxu0 0.0
    %563 = vmatpush1.msra.mxu0 0.0
    %564 = vmatprep.subr.mxu0 0.0
    %565 = vmatpush1.msra.mxu0 0.0
    %566 = vmatprep.subr.mxu0 0.0
    %567 = vmatpush1.msra.mxu0 0.0
    %568 = vmatprep.subr.mxu0 0.0
    %569 = vmatpush1.msra.mxu0 0.0
    %570 = vmatprep.subr.mxu0 0.0
    %571 = vmatpush1.msra.mxu0 0.0
    %572 = vmatprep.subr.mxu0 0.0
    %573 = vmatpush1.msra.mxu0 0.0
    %574 = vmatprep.subr.mxu0 0.0
    %575 = vmatpush1.msra.mxu0 0.0
    %576 = vmatprep.subr.mxu0 0.0
    %577 = vmatpush1.msra.mxu0 0.0
    %578 = vmatprep.subr.mxu0 0.0
    %579 = vmatpush1.msra.mxu0 0.0
    %580 = vmatprep.subr.mxu0 0.0
    %581 = vmatpush1.msra.mxu0 0.0
    %582 = vmatprep.mubr.f32.mxu0 0.0
    %583 = vmatmul.mubr.f32.gmra.mrb[0].mxu0 %v513
    %v584 = vpop.f32.mrb[0].mxu0
    %v585 = vadd.f32 0.0, %v584
    %v586 = vpop.f32.mrb[0].mxu0
    %587 = vmatprep.mubr.f32.mxu0 0.0
    %588 = vmatmul.mubr.f32.gmra.mrb[0].mxu0 %v516
    %v589 = vpop.f32.mrb[0].mxu0
    %v590 = vadd.f32 0.0, %v589
    %v591 = vpop.f32.mrb[0].mxu0
    %592 = vdwg.mxu0
    %v594 = vsel %vm146, %v63, 0
    %v597 = vsel %vm146, %v64, 0
    %599 = vmatprep.subr.mxu0 0.0
    %600 = vmatpush1.msra.mxu0 %v511
    %601 = vmatprep.subr.mxu0 0.0
    %602 = vmatpush1.msra.mxu0 0.0
    %603 = vmatprep.subr.mxu0 0.0
    %604 = vmatpush1.msra.mxu0 0.0
    %605 = vmatprep.subr.mxu0 0.0
    %606 = vmatpush1.msra.mxu0 0.0
    %607 = vmatprep.subr.mxu0 0.0
    %608 = vmatpush1.msra.mxu0 0.0
    %609 = vmatprep.subr.mxu0 0.0
    %610 = vmatpush1.msra.mxu0 0.0
    %611 = vmatprep.subr.mxu0 0.0
    %612 = vmatpush1.msra.mxu0 0.0
    %613 = vmatprep.subr.mxu0 0.0
    %614 = vmatpush1.msra.mxu0 0.0
    %615 = vmatprep.subr.mxu0 0.0
    %616 = vmatpush1.msra.mxu0 0.0
    %617 = vmatprep.subr.mxu0 0.0
    %618 = vmatpush1.msra.mxu0 0.0
    %619 = vmatprep.subr.mxu0 0.0
    %620 = vmatpush1.msra.mxu0 0.0
    %621 = vmatprep.subr.mxu0 0.0
    %622 = vmatpush1.msra.mxu0 0.0
    %623 = vmatprep.subr.mxu0 0.0
    %624 = vmatpush1.msra.mxu0 0.0
    %625 = vmatprep.subr.mxu0 0.0
    %626 = vmatpush1.msra.mxu0 0.0
    %627 = vmatprep.subr.mxu0 0.0
    %628 = vmatpush1.msra.mxu0 0.0
    %629 = vmatprep.subr.mxu0 0.0
    %630 = vmatpush1.msra.mxu0 0.0
    %631 = vmatprep.subr.mxu0 0.0
    %632 = vmatpush1.msra.mxu0 0.0
    %633 = vmatprep.subr.mxu0 0.0
    %634 = vmatpush1.msra.mxu0 0.0
    %635 = vmatprep.subr.mxu0 0.0
    %636 = vmatpush1.msra.mxu0 0.0
    %637 = vmatprep.subr.mxu0 0.0
    %638 = vmatpush1.msra.mxu0 0.0
    %639 = vmatprep.subr.mxu0 0.0
    %640 = vmatpush1.msra.mxu0 0.0
    %641 = vmatprep.subr.mxu0 0.0
    %642 = vmatpush1.msra.mxu0 0.0
    %643 = vmatprep.subr.mxu0 0.0
    %644 = vmatpush1.msra.mxu0 0.0
    %645 = vmatprep.subr.mxu0 0.0
    %646 = vmatpush1.msra.mxu0 0.0
    %647 = vmatprep.subr.mxu0 0.0
    %648 = vmatpush1.msra.mxu0 0.0
    %649 = vmatprep.subr.mxu0 0.0
    %650 = vmatpush1.msra.mxu0 0.0
    %651 = vmatprep.subr.mxu0 0.0
    %652 = vmatpush1.msra.mxu0 0.0
    %653 = vmatprep.subr.mxu0 0.0
    %654 = vmatpush1.msra.mxu0 0.0
    %655 = vmatprep.subr.mxu0 0.0
    %656 = vmatpush1.msra.mxu0 0.0
    %657 = vmatprep.subr.mxu0 0.0
    %658 = vmatpush1.msra.mxu0 0.0
    %659 = vmatprep.subr.mxu0 0.0
    %660 = vmatpush1.msra.mxu0 0.0
    %661 = vmatprep.subr.mxu0 0.0
    %662 = vmatpush1.msra.mxu0 0.0
    %663 = vmatprep.mubr.f32.mxu0 0.0
    %664 = vmatmul.mubr.f32.gmra.mrb[0].mxu0 %v594
    %v665 = vpop.f32.mrb[0].mxu0
    %v666 = vadd.f32 0.0, %v665
    %v667 = vpop.f32.mrb[0].mxu0
    %668 = vmatprep.mubr.f32.mxu0 0.0
    %669 = vmatmul.mubr.f32.gmra.mrb[0].mxu0 %v597
    %v670 = vpop.f32.mrb[0].mxu0
    %v671 = vadd.f32 0.0, %v670
    %v672 = vpop.f32.mrb[0].mxu0
    %673 = vdwg.mxu0
    %v674 = vld [vmem:[#allocation2 + $0x200] sm:$0xff]
    %v675 = vld [vmem:[#allocation2 + $0x208] sm:$0xff]
    %v676 = vld [vmem:[#allocation2 + $0x210] sm:$0xff]
    %v677 = vld [vmem:[#allocation2 + $0x218] sm:$0xff]
    %v678 = vld [vmem:[#allocation2 + $0x220] sm:$0xff]
    %v679 = vld [vmem:[#allocation2 + $0x228] sm:$0xff]
    %v680 = vld [vmem:[#allocation2 + $0x230] sm:$0xff]
    %v681 = vld [vmem:[#allocation2 + $0x238] sm:$0xff]
    %v682 = vld [vmem:[#allocation2 + $0x240] sm:$0xff]
    %v683 = vld [vmem:[#allocation2 + $0x248] sm:$0xff]
    %v684 = vld [vmem:[#allocation2 + $0x250] sm:$0xff]
    %v685 = vld [vmem:[#allocation2 + $0x258] sm:$0xff]
    %v686 = vld [vmem:[#allocation2 + $0x260] sm:$0xff]
    %v687 = vld [vmem:[#allocation2 + $0x268] sm:$0xff]
    %v688 = vld [vmem:[#allocation2 + $0x270] sm:$0xff]
    %v689 = vld [vmem:[#allocation2 + $0x278] sm:$0xff]
    %v690 = vld [vmem:[#allocation2 + $0x280] sm:$0xff]
    %v691 = vld [vmem:[#allocation2 + $0x288] sm:$0xff]
    %v692 = vld [vmem:[#allocation2 + $0x290] sm:$0xff]
    %v693 = vld [vmem:[#allocation2 + $0x298] sm:$0xff]
    %v694 = vld [vmem:[#allocation2 + $0x2a0] sm:$0xff]
    %v695 = vld [vmem:[#allocation2 + $0x2a8] sm:$0xff]
    %v696 = vld [vmem:[#allocation2 + $0x2b0] sm:$0xff]
    %v697 = vld [vmem:[#allocation2 + $0x2b8] sm:$0xff]
    %v698 = vld [vmem:[#allocation2 + $0x2c0] sm:$0xff]
    %v699 = vld [vmem:[#allocation2 + $0x2c8] sm:$0xff]
    %v700 = vld [vmem:[#allocation2 + $0x2d0] sm:$0xff]
    %v701 = vld [vmem:[#allocation2 + $0x2d8] sm:$0xff]
    %v702 = vld [vmem:[#allocation2 + $0x2e0] sm:$0xff]
    %v703 = vld [vmem:[#allocation2 + $0x2e8] sm:$0xff]
    %v704 = vld [vmem:[#allocation2 + $0x2f0] sm:$0xff]
    %v705 = vld [vmem:[#allocation2 + $0x2f8] sm:$0xff]
    %v706 = vlaneseq
    %v707 = vshrl.u32 %v706, 7
    %v708 = vsub.s32 2, %v707
    %v709 = vrot.slane %v154, %v708
    %710 = vmatprep.subr.mxu0 0.0
    %711 = vmatpush1.msra.mxu0 %v674
    %712 = vmatprep.subr.mxu0 0.0
    %713 = vmatpush1.msra.mxu0 %v675
    %714 = vmatprep.subr.mxu0 0.0
    %715 = vmatpush1.msra.mxu0 %v676
    %716 = vmatprep.subr.mxu0 0.0
    %717 = vmatpush1.msra.mxu0 %v677
    %718 = vmatprep.subr.mxu0 0.0
    %719 = vmatpush1.msra.mxu0 %v678
    %720 = vmatprep.subr.mxu0 0.0
    %721 = vmatpush1.msra.mxu0 %v679
    %722 = vmatprep.subr.mxu0 0.0
    %723 = vmatpush1.msra.mxu0 %v680
    %724 = vmatprep.subr.mxu0 0.0
    %725 = vmatpush1.msra.mxu0 %v681
    %726 = vmatprep.subr.mxu0 0.0
    %727 = vmatpush1.msra.mxu0 %v682
    %728 = vmatprep.subr.mxu0 0.0
    %729 = vmatpush1.msra.mxu0 %v683
    %730 = vmatprep.subr.mxu0 0.0
    %731 = vmatpush1.msra.mxu0 %v684
    %732 = vmatprep.subr.mxu0 0.0
    %733 = vmatpush1.msra.mxu0 %v685
    %734 = vmatprep.subr.mxu0 0.0
    %735 = vmatpush1.msra.mxu0 %v686
    %736 = vmatprep.subr.mxu0 0.0
    %737 = vmatpush1.msra.mxu0 %v687
    %738 = vmatprep.subr.mxu0 0.0
    %739 = vmatpush1.msra.mxu0 %v688
    %740 = vmatprep.subr.mxu0 0.0
    %741 = vmatpush1.msra.mxu0 %v689
    %742 = vmatprep.subr.mxu0 0.0
    %743 = vmatpush1.msra.mxu0 %v690
    %744 = vmatprep.subr.mxu0 0.0
    %745 = vmatpush1.msra.mxu0 %v691
    %746 = vmatprep.subr.mxu0 0.0
    %747 = vmatpush1.msra.mxu0 %v692
    %748 = vmatprep.subr.mxu0 0.0
    %749 = vmatpush1.msra.mxu0 %v693
    %750 = vmatprep.subr.mxu0 0.0
    %751 = vmatpush1.msra.mxu0 %v694
    %752 = vmatprep.subr.mxu0 0.0
    %753 = vmatpush1.msra.mxu0 %v695
    %754 = vmatprep.subr.mxu0 0.0
    %755 = vmatpush1.msra.mxu0 %v696
    %756 = vmatprep.subr.mxu0 0.0
    %757 = vmatpush1.msra.mxu0 %v697
    %758 = vmatprep.subr.mxu0 0.0
    %759 = vmatpush1.msra.mxu0 %v698
    %760 = vmatprep.subr.mxu0 0.0
    %761 = vmatpush1.msra.mxu0 %v699
    %762 = vmatprep.subr.mxu0 0.0
    %763 = vmatpush1.msra.mxu0 %v700
    %764 = vmatprep.subr.mxu0 0.0
    %765 = vmatpush1.msra.mxu0 %v701
    %766 = vmatprep.subr.mxu0 0.0
    %767 = vmatpush1.msra.mxu0 %v702
    %768 = vmatprep.subr.mxu0 0.0
    %769 = vmatpush1.msra.mxu0 %v703
    %770 = vmatprep.subr.mxu0 0.0
    %771 = vmatpush1.msra.mxu0 %v704
    %772 = vmatprep.subr.mxu0 0.0
    %773 = vmatpush1.msra.mxu0 %v705
    %774 = vmatprep.mubr.f32.mxu0 %v666
    %775 = vmatmul.mubr.f32.gmra.mrb[0].mxu0 %v585
    %v776 = vpop.f32.mrb[0].mxu0
    %v777 = vadd.f32 %v709, %v776
    %v778 = vpop.f32.mrb[0].mxu0
    %779 = vmatprep.mubr.f32.mxu0 %v671
    %780 = vmatmul.mubr.f32.gmra.mrb[0].mxu0 %v590
    %v781 = vpop.f32.mrb[0].mxu0
    %v782 = vadd.f32 %v709, %v781
    %v783 = vpop.f32.mrb[0].mxu0
    %784 = vdwg.mxu0
    %v785 = vmax.f32 %v777, 0.0
    %v786 = vmax.f32 %v782, 0.0
    %v787 = vld [vmem:[#allocation2 + $0x300] sm:$0xff]
    %v788 = vld [vmem:[#allocation2 + $0x308] sm:$0xff]
    %v789 = vld [vmem:[#allocation2 + $0x310] sm:$0xff]
    %v790 = vld [vmem:[#allocation2 + $0x318] sm:$0xff]
    %v791 = vld [vmem:[#allocation2 + $0x320] sm:$0xff]
    %v792 = vld [vmem:[#allocation2 + $0x328] sm:$0xff]
    %v793 = vld [vmem:[#allocation2 + $0x330] sm:$0xff]
    %v794 = vld [vmem:[#allocation2 + $0x338] sm:$0xff]
    %v795 = vld [vmem:[#allocation2 + $0x340] sm:$0xff]
    %v796 = vld [vmem:[#allocation2 + $0x348] sm:$0xff]
    %v797 = vld [vmem:[#allocation2 + $0x350] sm:$0xff]
    %v798 = vld [vmem:[#allocation2 + $0x358] sm:$0xff]
    %v799 = vld [vmem:[#allocation2 + $0x360] sm:$0xff]
    %v800 = vld [vmem:[#allocation2 + $0x368] sm:$0xff]
    %v801 = vld [vmem:[#allocation2 + $0x370] sm:$0xff]
    %v802 = vld [vmem:[#allocation2 + $0x378] sm:$0xff]
    %v803 = vlaneseq
    %v804 = vshrl.u32 %v803, 7
    %v805 = vsub.s32 3, %v804
    %v806 = vrot.slane %v154, %v805
    %807 = vmatprep.subr.mxu0 0.0
    %808 = vmatpush1.msra.mxu0 %v787
    %809 = vmatprep.subr.mxu0 0.0
    %810 = vmatpush1.msra.mxu0 %v788
    %811 = vmatprep.subr.mxu0 0.0
    %812 = vmatpush1.msra.mxu0 %v789
    %813 = vmatprep.subr.mxu0 0.0
    %814 = vmatpush1.msra.mxu0 %v790
    %815 = vmatprep.subr.mxu0 0.0
    %816 = vmatpush1.msra.mxu0 %v791
    %817 = vmatprep.subr.mxu0 0.0
    %818 = vmatpush1.msra.mxu0 %v792
    %819 = vmatprep.subr.mxu0 0.0
    %820 = vmatpush1.msra.mxu0 %v793
    %821 = vmatprep.subr.mxu0 0.0
    %822 = vmatpush1.msra.mxu0 %v794
    %823 = vmatprep.subr.mxu0 0.0
    %824 = vmatpush1.msra.mxu0 %v795
    %825 = vmatprep.subr.mxu0 0.0
    %826 = vmatpush1.msra.mxu0 %v796
    %827 = vmatprep.subr.mxu0 0.0
    %828 = vmatpush1.msra.mxu0 %v797
    %829 = vmatprep.subr.mxu0 0.0
    %830 = vmatpush1.msra.mxu0 %v798
    %831 = vmatprep.subr.mxu0 0.0
    %832 = vmatpush1.msra.mxu0 %v799
    %833 = vmatprep.subr.mxu0 0.0
    %834 = vmatpush1.msra.mxu0 %v800
    %835 = vmatprep.subr.mxu0 0.0
    %836 = vmatpush1.msra.mxu0 %v801
    %837 = vmatprep.subr.mxu0 0.0
    %838 = vmatpush1.msra.mxu0 %v802
    %839 = vmatprep.subr.mxu0 0.0
    %840 = vmatpush1.msra.mxu0 0.0
    %841 = vmatprep.subr.mxu0 0.0
    %842 = vmatpush1.msra.mxu0 0.0
    %843 = vmatprep.subr.mxu0 0.0
    %844 = vmatpush1.msra.mxu0 0.0
    %845 = vmatprep.subr.mxu0 0.0
    %846 = vmatpush1.msra.mxu0 0.0
    %847 = vmatprep.subr.mxu0 0.0
    %848 = vmatpush1.msra.mxu0 0.0
    %849 = vmatprep.subr.mxu0 0.0
    %850 = vmatpush1.msra.mxu0 0.0
    %851 = vmatprep.subr.mxu0 0.0
    %852 = vmatpush1.msra.mxu0 0.0
    %853 = vmatprep.subr.mxu0 0.0
    %854 = vmatpush1.msra.mxu0 0.0
    %855 = vmatprep.subr.mxu0 0.0
    %856 = vmatpush1.msra.mxu0 0.0
    %857 = vmatprep.subr.mxu0 0.0
    %858 = vmatpush1.msra.mxu0 0.0
    %859 = vmatprep.subr.mxu0 0.0
    %860 = vmatpush1.msra.mxu0 0.0
    %861 = vmatprep.subr.mxu0 0.0
    %862 = vmatpush1.msra.mxu0 0.0
    %863 = vmatprep.subr.mxu0 0.0
    %864 = vmatpush1.msra.mxu0 0.0
    %865 = vmatprep.subr.mxu0 0.0
    %866 = vmatpush1.msra.mxu0 0.0
    %867 = vmatprep.subr.mxu0 0.0
    %868 = vmatpush1.msra.mxu0 0.0
    %869 = vmatprep.subr.mxu0 0.0
    %870 = vmatpush1.msra.mxu0 0.0
    %871 = vmatprep.mubr.f32.mxu0 0.0
    %872 = vmatmul.mubr.f32.gmra.mrb[0].mxu0 %v785
    %v873 = vpop.f32.mrb[0].mxu0
    %v874 = vadd.f32 %v806, %v873
    %v875 = vpop.f32.mrb[0].mxu0
    %876 = vmatprep.mubr.f32.mxu0 0.0
    %877 = vmatmul.mubr.f32.gmra.mrb[0].mxu0 %v786
    %v878 = vpop.f32.mrb[0].mxu0
    %v879 = vadd.f32 %v806, %v878
    %v880 = vpop.f32.mrb[0].mxu0
    %881 = vdwg.mxu0
    %v882 = vmax.f32 %v874, 0.0
    %v883 = vmax.f32 %v879, 0.0
    %v884 = vld [vmem:[#allocation2 + $0x380] sm:$0xff]
    %v885 = vld [vmem:[#allocation2 + $0x388] sm:$0xff]
    %v886 = vld [vmem:[#allocation2 + $0x390] sm:$0xff]
    %v887 = vld [vmem:[#allocation2 + $0x398] sm:$0xff]
    %v888 = vld [vmem:[#allocation2 + $0x3a0] sm:$0xff]
    %v889 = vld [vmem:[#allocation2 + $0x3a8] sm:$0xff]
    %v890 = vld [vmem:[#allocation2 + $0x3b0] sm:$0xff]
    %v891 = vld [vmem:[#allocation2 + $0x3b8] sm:$0xff]
    %v892 = vld [vmem:[#allocation2 + $0x3c0] sm:$0xff]
    %v893 = vld [vmem:[#allocation2 + $0x3c8] sm:$0xff]
    %v894 = vld [vmem:[#allocation2 + $0x3d0] sm:$0xff]
    %v895 = vld [vmem:[#allocation2 + $0x3d8] sm:$0xff]
    %v896 = vld [vmem:[#allocation2 + $0x3e0] sm:$0xff]
    %v897 = vld [vmem:[#allocation2 + $0x3e8] sm:$0xff]
    %v898 = vld [vmem:[#allocation2 + $0x3f0] sm:$0xff]
    %v899 = vld [vmem:[#allocation2 + $0x3f8] sm:$0xff]
    %v900 = vlaneseq
    %v901 = vshrl.u32 %v900, 7
    %v902 = vsub.s32 4, %v901
    %v903 = vrot.slane %v154, %v902
    %904 = vmatprep.subr.mxu0 0.0
    %905 = vmatpush1.msra.mxu0 %v884
    %906 = vmatprep.subr.mxu0 0.0
    %907 = vmatpush1.msra.mxu0 %v885
    %908 = vmatprep.subr.mxu0 0.0
    %909 = vmatpush1.msra.mxu0 %v886
    %910 = vmatprep.subr.mxu0 0.0
    %911 = vmatpush1.msra.mxu0 %v887
    %912 = vmatprep.subr.mxu0 0.0
    %913 = vmatpush1.msra.mxu0 %v888
    %914 = vmatprep.subr.mxu0 0.0
    %915 = vmatpush1.msra.mxu0 %v889
    %916 = vmatprep.subr.mxu0 0.0
    %917 = vmatpush1.msra.mxu0 %v890
    %918 = vmatprep.subr.mxu0 0.0
    %919 = vmatpush1.msra.mxu0 %v891
    %920 = vmatprep.subr.mxu0 0.0
    %921 = vmatpush1.msra.mxu0 %v892
    %922 = vmatprep.subr.mxu0 0.0
    %923 = vmatpush1.msra.mxu0 %v893
    %924 = vmatprep.subr.mxu0 0.0
    %925 = vmatpush1.msra.mxu0 %v894
    %926 = vmatprep.subr.mxu0 0.0
    %927 = vmatpush1.msra.mxu0 %v895
    %928 = vmatprep.subr.mxu0 0.0
    %929 = vmatpush1.msra.mxu0 %v896
    %930 = vmatprep.subr.mxu0 0.0
    %931 = vmatpush1.msra.mxu0 %v897
    %932 = vmatprep.subr.mxu0 0.0
    %933 = vmatpush1.msra.mxu0 %v898
    %934 = vmatprep.subr.mxu0 0.0
    %935 = vmatpush1.msra.mxu0 %v899
    %936 = vmatprep.subr.mxu0 0.0
    %937 = vmatpush1.msra.mxu0 0.0
    %938 = vmatprep.subr.mxu0 0.0
    %939 = vmatpush1.msra.mxu0 0.0
    %940 = vmatprep.subr.mxu0 0.0
    %941 = vmatpush1.msra.mxu0 0.0
    %942 = vmatprep.subr.mxu0 0.0
    %943 = vmatpush1.msra.mxu0 0.0
    %944 = vmatprep.subr.mxu0 0.0
    %945 = vmatpush1.msra.mxu0 0.0
    %946 = vmatprep.subr.mxu0 0.0
    %947 = vmatpush1.msra.mxu0 0.0
    %948 = vmatprep.subr.mxu0 0.0
    %949 = vmatpush1.msra.mxu0 0.0
    %950 = vmatprep.subr.mxu0 0.0
    %951 = vmatpush1.msra.mxu0 0.0
    %952 = vmatprep.subr.mxu0 0.0
    %953 = vmatpush1.msra.mxu0 0.0
    %954 = vmatprep.subr.mxu0 0.0
    %955 = vmatpush1.msra.mxu0 0.0
    %956 = vmatprep.subr.mxu0 0.0
    %957 = vmatpush1.msra.mxu0 0.0
    %958 = vmatprep.subr.mxu0 0.0
    %959 = vmatpush1.msra.mxu0 0.0
    %960 = vmatprep.subr.mxu0 0.0
    %961 = vmatpush1.msra.mxu0 0.0
    %962 = vmatprep.subr.mxu0 0.0
    %963 = vmatpush1.msra.mxu0 0.0
    %964 = vmatprep.subr.mxu0 0.0
    %965 = vmatpush1.msra.mxu0 0.0
    %966 = vmatprep.subr.mxu0 0.0
    %967 = vmatpush1.msra.mxu0 0.0
    %968 = vmatprep.mubr.f32.mxu0 0.0
    %969 = vmatmul.mubr.f32.gmra.mrb[0].mxu0 %v882
    %v970 = vpop.f32.mrb[0].mxu0
    %v971 = vadd.f32 %v903, %v970
    %v972 = vpop.f32.mrb[0].mxu0
    %973 = vmatprep.mubr.f32.mxu0 0.0
    %974 = vmatmul.mubr.f32.gmra.mrb[0].mxu0 %v883
    %v975 = vpop.f32.mrb[0].mxu0
    %v976 = vadd.f32 %v903, %v975
    %v977 = vpop.f32.mrb[0].mxu0
    %978 = vdwg.mxu0
    %v979 = vmax.f32 %v971, 0.0
    %v980 = vmax.f32 %v976, 0.0
    %v981 = vld [vmem:[#allocation2 + $0x400] sm:$0xff]
    %v982 = vld [vmem:[#allocation2 + $0x408] sm:$0xff]
    %v983 = vld [vmem:[#allocation2 + $0x410] sm:$0xff]
    %v984 = vld [vmem:[#allocation2 + $0x418] sm:$0xff]
    %v985 = vld [vmem:[#allocation2 + $0x420] sm:$0xff]
    %v986 = vld [vmem:[#allocation2 + $0x428] sm:$0xff]
    %v987 = vld [vmem:[#allocation2 + $0x430] sm:$0xff]
    %v988 = vld [vmem:[#allocation2 + $0x438] sm:$0xff]
    %v989 = vld [vmem:[#allocation2 + $0x440] sm:$0xff]
    %v990 = vld [vmem:[#allocation2 + $0x448] sm:$0xff]
    %v991 = vld [vmem:[#allocation2 + $0x450] sm:$0xff]
    %v992 = vld [vmem:[#allocation2 + $0x458] sm:$0xff]
    %v993 = vld [vmem:[#allocation2 + $0x460] sm:$0xff]
    %v994 = vld [vmem:[#allocation2 + $0x468] sm:$0xff]
    %v995 = vld [vmem:[#allocation2 + $0x470] sm:$0xff]
    %v996 = vld [vmem:[#allocation2 + $0x478] sm:$0xff]
    %v997 = vlaneseq
    %v998 = vshrl.u32 %v997, 7
    %v999 = vsub.s32 5, %v998
    %v1000 = vrot.slane %v154, %v999
    %1001 = vmatprep.subr.mxu0 0.0
    %1002 = vmatpush1.msra.mxu0 %v981
    %1003 = vmatprep.subr.mxu0 0.0
    %1004 = vmatpush1.msra.mxu0 %v982
    %1005 = vmatprep.subr.mxu0 0.0
    %1006 = vmatpush1.msra.mxu0 %v983
    %1007 = vmatprep.subr.mxu0 0.0
    %1008 = vmatpush1.msra.mxu0 %v984
    %1009 = vmatprep.subr.mxu0 0.0
    %1010 = vmatpush1.msra.mxu0 %v985
    %1011 = vmatprep.subr.mxu0 0.0
    %1012 = vmatpush1.msra.mxu0 %v986
    %1013 = vmatprep.subr.mxu0 0.0
    %1014 = vmatpush1.msra.mxu0 %v987
    %1015 = vmatprep.subr.mxu0 0.0
    %1016 = vmatpush1.msra.mxu0 %v988
    %1017 = vmatprep.subr.mxu0 0.0
    %1018 = vmatpush1.msra.mxu0 %v989
    %1019 = vmatprep.subr.mxu0 0.0
    %1020 = vmatpush1.msra.mxu0 %v990
    %1021 = vmatprep.subr.mxu0 0.0
    %1022 = vmatpush1.msra.mxu0 %v991
    %1023 = vmatprep.subr.mxu0 0.0
    %1024 = vmatpush1.msra.mxu0 %v992
    %1025 = vmatprep.subr.mxu0 0.0
    %1026 = vmatpush1.msra.mxu0 %v993
    %1027 = vmatprep.subr.mxu0 0.0
    %1028 = vmatpush1.msra.mxu0 %v994
    %1029 = vmatprep.subr.mxu0 0.0
    %1030 = vmatpush1.msra.mxu0 %v995
    %1031 = vmatprep.subr.mxu0 0.0
    %1032 = vmatpush1.msra.mxu0 %v996
    %1033 = vmatprep.subr.mxu0 0.0
    %1034 = vmatpush1.msra.mxu0 0.0
    %1035 = vmatprep.subr.mxu0 0.0
    %1036 = vmatpush1.msra.mxu0 0.0
    %1037 = vmatprep.subr.mxu0 0.0
    %1038 = vmatpush1.msra.mxu0 0.0
    %1039 = vmatprep.subr.mxu0 0.0
    %1040 = vmatpush1.msra.mxu0 0.0
    %1041 = vmatprep.subr.mxu0 0.0
    %1042 = vmatpush1.msra.mxu0 0.0
    %1043 = vmatprep.subr.mxu0 0.0
    %1044 = vmatpush1.msra.mxu0 0.0
    %1045 = vmatprep.subr.mxu0 0.0
    %1046 = vmatpush1.msra.mxu0 0.0
    %1047 = vmatprep.subr.mxu0 0.0
    %1048 = vmatpush1.msra.mxu0 0.0
    %1049 = vmatprep.subr.mxu0 0.0
    %1050 = vmatpush1.msra.mxu0 0.0
    %1051 = vmatprep.subr.mxu0 0.0
    %1052 = vmatpush1.msra.mxu0 0.0
    %1053 = vmatprep.subr.mxu0 0.0
    %1054 = vmatpush1.msra.mxu0 0.0
    %1055 = vmatprep.subr.mxu0 0.0
    %1056 = vmatpush1.msra.mxu0 0.0
    %1057 = vmatprep.subr.mxu0 0.0
    %1058 = vmatpush1.msra.mxu0 0.0
    %1059 = vmatprep.subr.mxu0 0.0
    %1060 = vmatpush1.msra.mxu0 0.0
    %1061 = vmatprep.subr.mxu0 0.0
    %1062 = vmatpush1.msra.mxu0 0.0
    %1063 = vmatprep.subr.mxu0 0.0
    %1064 = vmatpush1.msra.mxu0 0.0
    %1065 = vmatprep.mubr.f32.mxu0 0.0
    %1066 = vmatmul.mubr.f32.gmra.mrb[0].mxu0 %v979
    %v1067 = vpop.f32.mrb[0].mxu0
    %v1068 = vadd.f32 %v1000, %v1067
    %v1069 = vpop.f32.mrb[0].mxu0
    %1070 = vmatprep.mubr.f32.mxu0 0.0
    %1071 = vmatmul.mubr.f32.gmra.mrb[0].mxu0 %v980
    %v1072 = vpop.f32.mrb[0].mxu0
    %v1073 = vadd.f32 %v1000, %v1072
    %v1074 = vpop.f32.mrb[0].mxu0
    %1075 = vdwg.mxu0
    %v1076 = vmax.f32 %v1068, 0.0
    %v1077 = vmax.f32 %v1073, 0.0
    %v1078 = vld [vmem:[#allocation2 + $0x480] sm:$0xff]
    %v1079 = vld [vmem:[#allocation2 + $0x488] sm:$0xff]
    %v1080 = vld [vmem:[#allocation2 + $0x490] sm:$0xff]
    %v1081 = vld [vmem:[#allocation2 + $0x498] sm:$0xff]
    %v1082 = vld [vmem:[#allocation2 + $0x4a0] sm:$0xff]
    %v1083 = vld [vmem:[#allocation2 + $0x4a8] sm:$0xff]
    %v1084 = vld [vmem:[#allocation2 + $0x4b0] sm:$0xff]
    %v1085 = vld [vmem:[#allocation2 + $0x4b8] sm:$0xff]
    %v1086 = vld [vmem:[#allocation2 + $0x4c0] sm:$0xff]
    %v1087 = vld [vmem:[#allocation2 + $0x4c8] sm:$0xff]
    %v1088 = vld [vmem:[#allocation2 + $0x4d0] sm:$0xff]
    %v1089 = vld [vmem:[#allocation2 + $0x4d8] sm:$0xff]
    %v1090 = vld [vmem:[#allocation2 + $0x4e0] sm:$0xff]
    %v1091 = vld [vmem:[#allocation2 + $0x4e8] sm:$0xff]
    %v1092 = vld [vmem:[#allocation2 + $0x4f0] sm:$0xff]
    %v1093 = vld [vmem:[#allocation2 + $0x4f8] sm:$0xff]
    %v1094 = vlaneseq
    %v1095 = vshrl.u32 %v1094, 7
    %v1096 = vsub.s32 6, %v1095
    %v1097 = vrot.slane %v154, %v1096
    %1098 = vmatprep.subr.mxu0 0.0
    %1099 = vmatpush1.msra.mxu0 %v1078
    %1100 = vmatprep.subr.mxu0 0.0
    %1101 = vmatpush1.msra.mxu0 %v1079
    %1102 = vmatprep.subr.mxu0 0.0
    %1103 = vmatpush1.msra.mxu0 %v1080
    %1104 = vmatprep.subr.mxu0 0.0
    %1105 = vmatpush1.msra.mxu0 %v1081
    %1106 = vmatprep.subr.mxu0 0.0
    %1107 = vmatpush1.msra.mxu0 %v1082
    %1108 = vmatprep.subr.mxu0 0.0
    %1109 = vmatpush1.msra.mxu0 %v1083
    %1110 = vmatprep.subr.mxu0 0.0
    %1111 = vmatpush1.msra.mxu0 %v1084
    %1112 = vmatprep.subr.mxu0 0.0
    %1113 = vmatpush1.msra.mxu0 %v1085
    %1114 = vmatprep.subr.mxu0 0.0
    %1115 = vmatpush1.msra.mxu0 %v1086
    %1116 = vmatprep.subr.mxu0 0.0
    %1117 = vmatpush1.msra.mxu0 %v1087
    %1118 = vmatprep.subr.mxu0 0.0
    %1119 = vmatpush1.msra.mxu0 %v1088
    %1120 = vmatprep.subr.mxu0 0.0
    %1121 = vmatpush1.msra.mxu0 %v1089
    %1122 = vmatprep.subr.mxu0 0.0
    %1123 = vmatpush1.msra.mxu0 %v1090
    %1124 = vmatprep.subr.mxu0 0.0
    %1125 = vmatpush1.msra.mxu0 %v1091
    %1126 = vmatprep.subr.mxu0 0.0
    %1127 = vmatpush1.msra.mxu0 %v1092
    %1128 = vmatprep.subr.mxu0 0.0
    %1129 = vmatpush1.msra.mxu0 %v1093
    %1130 = vmatprep.subr.mxu0 0.0
    %1131 = vmatpush1.msra.mxu0 0.0
    %1132 = vmatprep.subr.mxu0 0.0
    %1133 = vmatpush1.msra.mxu0 0.0
    %1134 = vmatprep.subr.mxu0 0.0
    %1135 = vmatpush1.msra.mxu0 0.0
    %1136 = vmatprep.subr.mxu0 0.0
    %1137 = vmatpush1.msra.mxu0 0.0
    %1138 = vmatprep.subr.mxu0 0.0
    %1139 = vmatpush1.msra.mxu0 0.0
    %1140 = vmatprep.subr.mxu0 0.0
    %1141 = vmatpush1.msra.mxu0 0.0
    %1142 = vmatprep.subr.mxu0 0.0
    %1143 = vmatpush1.msra.mxu0 0.0
    %1144 = vmatprep.subr.mxu0 0.0
    %1145 = vmatpush1.msra.mxu0 0.0
    %1146 = vmatprep.subr.mxu0 0.0
    %1147 = vmatpush1.msra.mxu0 0.0
    %1148 = vmatprep.subr.mxu0 0.0
    %1149 = vmatpush1.msra.mxu0 0.0
    %1150 = vmatprep.subr.mxu0 0.0
    %1151 = vmatpush1.msra.mxu0 0.0
    %1152 = vmatprep.subr.mxu0 0.0
    %1153 = vmatpush1.msra.mxu0 0.0
    %1154 = vmatprep.subr.mxu0 0.0
    %1155 = vmatpush1.msra.mxu0 0.0
    %1156 = vmatprep.subr.mxu0 0.0
    %1157 = vmatpush1.msra.mxu0 0.0
    %1158 = vmatprep.subr.mxu0 0.0
    %1159 = vmatpush1.msra.mxu0 0.0
    %1160 = vmatprep.subr.mxu0 0.0
    %1161 = vmatpush1.msra.mxu0 0.0
    %1162 = vmatprep.mubr.f32.mxu0 0.0
    %1163 = vmatmul.mubr.f32.gmra.mrb[0].mxu0 %v1076
    %v1164 = vpop.f32.mrb[0].mxu0
    %v1165 = vadd.f32 %v1097, %v1164
    %v1166 = vpop.f32.mrb[0].mxu0
    %1167 = vmatprep.mubr.f32.mxu0 0.0
    %1168 = vmatmul.mubr.f32.gmra.mrb[0].mxu0 %v1077
    %v1169 = vpop.f32.mrb[0].mxu0
    %v1170 = vadd.f32 %v1097, %v1169
    %v1171 = vpop.f32.mrb[0].mxu0
    %1172 = vdwg.mxu0
    %v1173 = vmax.f32 %v1165, 0.0
    %v1174 = vmax.f32 %v1170, 0.0
    %v1175 = vld [vmem:[#allocation2 + $0x500] sm:$0xff]
    %v1176 = vld [vmem:[#allocation2 + $0x508] sm:$0xff]
    %v1177 = vld [vmem:[#allocation2 + $0x510] sm:$0xff]
    %v1178 = vld [vmem:[#allocation2 + $0x518] sm:$0xff]
    %v1179 = vld [vmem:[#allocation2 + $0x520] sm:$0xff]
    %v1180 = vld [vmem:[#allocation2 + $0x528] sm:$0xff]
    %v1181 = vld [vmem:[#allocation2 + $0x530] sm:$0xff]
    %v1182 = vld [vmem:[#allocation2 + $0x538] sm:$0xff]
    %v1183 = vld [vmem:[#allocation2 + $0x540] sm:$0xff]
    %v1184 = vld [vmem:[#allocation2 + $0x548] sm:$0xff]
    %v1185 = vld [vmem:[#allocation2 + $0x550] sm:$0xff]
    %v1186 = vld [vmem:[#allocation2 + $0x558] sm:$0xff]
    %v1187 = vld [vmem:[#allocation2 + $0x560] sm:$0xff]
    %v1188 = vld [vmem:[#allocation2 + $0x568] sm:$0xff]
    %v1189 = vld [vmem:[#allocation2 + $0x570] sm:$0xff]
    %v1190 = vld [vmem:[#allocation2 + $0x578] sm:$0xff]
    %v1191 = vlaneseq
    %v1192 = vshrl.u32 %v1191, 7
    %v1193 = vsub.s32 7, %v1192
    %v1194 = vrot.slane %v154, %v1193
    %1195 = vmatprep.subr.mxu0 0.0
    %1196 = vmatpush1.msra.mxu0 %v1175
    %1197 = vmatprep.subr.mxu0 0.0
    %1198 = vmatpush1.msra.mxu0 %v1176
    %1199 = vmatprep.subr.mxu0 0.0
    %1200 = vmatpush1.msra.mxu0 %v1177
    %1201 = vmatprep.subr.mxu0 0.0
    %1202 = vmatpush1.msra.mxu0 %v1178
    %1203 = vmatprep.subr.mxu0 0.0
    %1204 = vmatpush1.msra.mxu0 %v1179
    %1205 = vmatprep.subr.mxu0 0.0
    %1206 = vmatpush1.msra.mxu0 %v1180
    %1207 = vmatprep.subr.mxu0 0.0
    %1208 = vmatpush1.msra.mxu0 %v1181
    %1209 = vmatprep.subr.mxu0 0.0
    %1210 = vmatpush1.msra.mxu0 %v1182
    %1211 = vmatprep.subr.mxu0 0.0
    %1212 = vmatpush1.msra.mxu0 %v1183
    %1213 = vmatprep.subr.mxu0 0.0
    %1214 = vmatpush1.msra.mxu0 %v1184
    %1215 = vmatprep.subr.mxu0 0.0
    %1216 = vmatpush1.msra.mxu0 %v1185
    %1217 = vmatprep.subr.mxu0 0.0
    %1218 = vmatpush1.msra.mxu0 %v1186
    %1219 = vmatprep.subr.mxu0 0.0
    %1220 = vmatpush1.msra.mxu0 %v1187
    %1221 = vmatprep.subr.mxu0 0.0
    %1222 = vmatpush1.msra.mxu0 %v1188
    %1223 = vmatprep.subr.mxu0 0.0
    %1224 = vmatpush1.msra.mxu0 %v1189
    %1225 = vmatprep.subr.mxu0 0.0
    %1226 = vmatpush1.msra.mxu0 %v1190
    %1227 = vmatprep.subr.mxu0 0.0
    %1228 = vmatpush1.msra.mxu0 0.0
    %1229 = vmatprep.subr.mxu0 0.0
    %1230 = vmatpush1.msra.mxu0 0.0
    %1231 = vmatprep.subr.mxu0 0.0
    %1232 = vmatpush1.msra.mxu0 0.0
    %1233 = vmatprep.subr.mxu0 0.0
    %1234 = vmatpush1.msra.mxu0 0.0
    %1235 = vmatprep.subr.mxu0 0.0
    %1236 = vmatpush1.msra.mxu0 0.0
    %1237 = vmatprep.subr.mxu0 0.0
    %1238 = vmatpush1.msra.mxu0 0.0
    %1239 = vmatprep.subr.mxu0 0.0
    %1240 = vmatpush1.msra.mxu0 0.0
    %1241 = vmatprep.subr.mxu0 0.0
    %1242 = vmatpush1.msra.mxu0 0.0
    %1243 = vmatprep.subr.mxu0 0.0
    %1244 = vmatpush1.msra.mxu0 0.0
    %1245 = vmatprep.subr.mxu0 0.0
    %1246 = vmatpush1.msra.mxu0 0.0
    %1247 = vmatprep.subr.mxu0 0.0
    %1248 = vmatpush1.msra.mxu0 0.0
    %1249 = vmatprep.subr.mxu0 0.0
    %1250 = vmatpush1.msra.mxu0 0.0
    %1251 = vmatprep.subr.mxu0 0.0
    %1252 = vmatpush1.msra.mxu0 0.0
    %1253 = vmatprep.subr.mxu0 0.0
    %1254 = vmatpush1.msra.mxu0 0.0
    %1255 = vmatprep.subr.mxu0 0.0
    %1256 = vmatpush1.msra.mxu0 0.0
    %1257 = vmatprep.subr.mxu0 0.0
    %1258 = vmatpush1.msra.mxu0 0.0
    %1259 = vmatprep.mubr.f32.mxu0 0.0
    %1260 = vmatmul.mubr.f32.gmra.mrb[0].mxu0 %v1173
    %v1261 = vpop.f32.mrb[0].mxu0
    %v1262 = vadd.f32 %v1194, %v1261
    %v1263 = vpop.f32.mrb[0].mxu0
    %1264 = vmatprep.mubr.f32.mxu0 0.0
    %1265 = vmatmul.mubr.f32.gmra.mrb[0].mxu0 %v1174
    %v1266 = vpop.f32.mrb[0].mxu0
    %v1267 = vadd.f32 %v1194, %v1266
    %v1268 = vpop.f32.mrb[0].mxu0
    %1269 = vdwg.mxu0
    %1270 = vst [vmem:[%s5] sm:$0xff] %v1262
    %1271 = vst [vmem:[%s5 + $0x8] sm:$0xff] %v1267
    // Predicated region
    $region26: #{scene_graph_forward.1} parent=1 // pred_check
      _
    $region27: #{scene_graph_forward.1} parent=1 // pred_check_branch
      %1273 = sbr.rel (0) target = $region29
    $region28: #{scene_graph_forward.1} parent=1 // pred_region
      _
    $region29: #{scene_graph_forward.1} parent=1 // pred_fallthru
      _
    // Predicated region
    $region30: #{scene_graph_forward.1} parent=1 // pred_check
      _
    $region31: #{scene_graph_forward.1} parent=1 // pred_check_branch
      %1275 = sbr.rel (0) target = $region33
    $region32: #{scene_graph_forward.1} parent=1 // pred_region
      _
    $region33: #{scene_graph_forward.1} parent=1 // pred_fallthru
      _
    %1276 = vsyncpa [#allocation3], 1

</llo_original>
